<compile_context>
chip_gen: v5e
topology: v5e:2x2
jax: 0.10.0
libtpu: 0.0.40
codegen_flags: <defaults>
</compile_context>

<pallas_src>
import functools
import math

import jax
import jax.numpy as jnp
from jax import lax
from jax.experimental import pallas as pl
from jax.experimental.pallas import tpu as pltpu

EPS = 1e-5                      # nn.LayerNorm default eps
_STORE = jnp.bfloat16           # storage dtype for weights / activations
_NEG_INF = -1e30                # additive mask for padded keys


# ----------------------------- small helpers -------------------------------

def _itemsize(dt):
    return jnp.dtype(dt).itemsize


def _vmem_limit_bytes(working_set):
    """Per-generation VMEM request: ~2x working set, capped below physical."""
    try:
        cap = int(pltpu.get_tpu_info().vmem_capacity_bytes)
    except Exception:
        cap = 64 * 1024 * 1024
    want = 2 * int(working_set) + (4 << 20)
    return int(max(8 << 20, min(want, 48 << 20, (cap * 3) // 4)))


def _layernorm(x, g, b):
    # PyTorch LayerNorm: biased variance over last dim, f32 math.
    mu = jnp.mean(x, axis=-1, keepdims=True)
    var = jnp.mean((x - mu) ** 2, axis=-1, keepdims=True)
    return (x - mu) * jax.lax.rsqrt(var + EPS) * g + b


def _gelu_exact(x):
    # nn.GELU() default = exact erf formulation (kept for parity).
    return 0.5 * x * (1.0 + jax.lax.erf(x * (1.0 / math.sqrt(2.0))))


# ------------------------------ Pallas kernels ------------------------------

def patch_embed_kernel(p_ref, pos_ref, ln1g_ref, ln1b_ref, w_ref, b_ref,
                       ln2g_ref, ln2b_ref, o_ref):
    # p_ref: (1, TN, patch_dim) f32, pos_ref: (1, TN, dim) bf16, out bf16.
    x = p_ref[0].astype(jnp.float32)
    x = _layernorm(x, ln1g_ref[...], ln1b_ref[...])
    y = jnp.dot(x.astype(w_ref.dtype), w_ref[...],
                preferred_element_type=jnp.float32) + b_ref[...]
    y = _layernorm(y, ln2g_ref[...], ln2b_ref[...])
    o_ref[0] = (y + pos_ref[0].astype(jnp.float32)).astype(o_ref.dtype)


def layer_kernel(x_ref,
                 ln1g_ref, ln1b_ref, wqkv_ref, wo_ref, bo_ref,
                 ln2g_ref, ln2b_ref, w1_ref, b1_ref, w2_ref, b2_ref,
                 o_ref, qkv_scr, oacc_scr,
                 *, heads, dim_head, n_valid):
    # Fused transformer layer: PreNorm->MHA->residual->PreNorm->MLP->residual.
    # x_ref: (1, N, dim) bf16; residual stream kept in f32.
    scale = dim_head ** -0.5

    x = x_ref[0].astype(jnp.float32)                       # (N, dim)
    n_tok = x.shape[0]

    # ---------------- attention ----------------
    h = _layernorm(x, ln1g_ref[...], ln1b_ref[...])
    qkv = jnp.dot(h.astype(wqkv_ref.dtype), wqkv_ref[...],
                  preferred_element_type=jnp.float32)      # (N, 3*inner) f32

    # Re-layout to (3*heads, N, dh) bf16 so the head loop only does leading-dim
    # (dynamic) indexing; softmax scale folded into q here (O(N*dh), not N^2).
    for j in range(3 * heads):                             # static, lane-aligned
        blk = qkv[:, j * dim_head:(j + 1) * dim_head]
        if j < heads:
            blk = blk * scale
        qkv_scr[j] = blk.astype(qkv_scr.dtype)

    # Additive key mask for padded tokens (static decision; hoisted out of loop).
    if n_valid < n_tok:
        col = lax.broadcasted_iota(jnp.int32, (1, n_tok), 1)
        key_bias = jnp.where(col < n_valid, 0.0, _NEG_INF).astype(jnp.float32)
    else:
        key_bias = None

    oacc_scr[...] = jnp.zeros_like(oacc_scr)

    def head_body(hd, carry):
        q = qkv_scr[hd]                                    # (N, dh) bf16, scaled
        k = qkv_scr[heads + hd]                            # (N, dh) bf16
        v = qkv_scr[2 * heads + hd]                        # (N, dh) bf16
        # scores = q @ k^T (contract last-vs-last, no transpose); bf16 in, f32 acc.
        s = lax.dot_general(q, k, (((1,), (1,)), ((), ())),
                            preferred_element_type=jnp.float32)   # (N, N)
        if key_bias is not None:
            s = s + key_bias
        s = s - jnp.max(s, axis=-1, keepdims=True)
        p = jnp.exp(s)
        p = p * pl.reciprocal(jnp.sum(p, axis=-1, keepdims=True), approx=True)
        head_out = jnp.dot(p.astype(v.dtype), v,
                           preferred_element_type=jnp.float32)    # (N, dh)
        # Fused per-head output projection: o += head_out @ Wo[hd].
        oacc_scr[...] += jnp.dot(head_out.astype(wo_ref.dtype), wo_ref[hd],
                                 preferred_element_type=jnp.float32)
        return carry

    lax.fori_loop(0, heads, head_body, 0, unroll=True)

    x = x + oacc_scr[...] + bo_ref[...]                    # residual 1 (+ bias)

    # ---------------- feed-forward ----------------
    h2 = _layernorm(x, ln2g_ref[...], ln2b_ref[...])
    u = jnp.dot(h2.astype(w1_ref.dtype), w1_ref[...],
                preferred_element_type=jnp.float32) + b1_ref[...]
    u = _gelu_exact(u)
    y = jnp.dot(u.astype(w2_ref.dtype), w2_ref[...],
                preferred_element_type=jnp.float32) + b2_ref[...]
    o_ref[0] = (x + y).astype(o_ref.dtype)                 # residual 2


# ------------------------------ wrappers ------------------------------------

def _token_tile(n, cap=512):
    if n <= cap:
        return n                                           # full dim per step
    for t in (512, 256, 128, 64, 32, 16, 8):
        if n % t == 0:
            return t
    return n                                               # fallback: full dim


def run_patch_embed(patches, pos, pp):
    B, n, pd = patches.shape
    dim = pp["w"].shape[1]
    tn = _token_tile(n)

    def const(shape):  # constant-index weight/bias blocks: single-buffered
        zeros = (0,) * len(shape)
        return pl.BlockSpec(shape, lambda b, t, _z=zeros: _z,
                            pipeline_mode=pl.Buffered(1))

    in_specs = [
        pl.BlockSpec((1, tn, pd), lambda b, t: (b, t, 0)),
        pl.BlockSpec((1, tn, dim), lambda b, t: (b, t, 0)),
        const((1, pd)), const((1, pd)),
        const((pd, dim)), const((1, dim)),
        const((1, dim)), const((1, dim)),
    ]
    ws = (2 * tn * (pd * _itemsize(patches.dtype) + dim * _itemsize(pos.dtype)
                    + dim * _itemsize(_STORE))
          + pd * dim * _itemsize(_STORE)
          + tn * (pd + 2 * dim) * 4)
    return pl.pallas_call(
        patch_embed_kernel,
        out_shape=jax.ShapeDtypeStruct((B, n, dim), _STORE),
        grid=(B, n // tn),
        in_specs=in_specs,
        out_specs=pl.BlockSpec((1, tn, dim), lambda b, t: (b, t, 0)),
        compiler_params=pltpu.CompilerParams(
            dimension_semantics=("parallel", "parallel"),
            vmem_limit_bytes=_vmem_limit_bytes(ws)),
    )(patches, pos, pp["ln1_g"], pp["ln1_b"], pp["w"], pp["b"],
      pp["ln2_g"], pp["ln2_b"])


def run_layer(x, lp, heads, dim_head, n_valid):
    B, N, dim = x.shape
    inner = heads * dim_head
    mlp = lp["w1"].shape[1]
    wo3 = lp["w_out"].reshape(heads, dim_head, dim)        # per-head Wo blocks

    kern = functools.partial(layer_kernel, heads=heads, dim_head=dim_head,
                             n_valid=n_valid)

    def const(shape):  # constant-index weight/bias blocks: single-buffered
        zeros = (0,) * len(shape)
        return pl.BlockSpec(shape, lambda b, _z=zeros: _z,
                            pipeline_mode=pl.Buffered(1))

    in_specs = [
        pl.BlockSpec((1, N, dim), lambda b: (b, 0, 0)),
        const((1, dim)), const((1, dim)),
        const((dim, 3 * inner)),
        const((heads, dim_head, dim)), const((1, dim)),
        const((1, dim)), const((1, dim)),
        const((dim, mlp)), const((1, mlp)),
        const((mlp, dim)), const((1, dim)),
    ]

    ws = (4 * N * dim * _itemsize(x.dtype)                               # x + out
          + (dim * 3 * inner + inner * dim + 2 * dim * mlp) * _itemsize(_STORE)
          + 3 * heads * N * dim_head * _itemsize(_STORE) + N * dim * 4  # scratch
          + N * N * 4 + N * mlp * 4 + N * 3 * inner * 4)                # f32 temps

    return pl.pallas_call(
        kern,
        out_shape=jax.ShapeDtypeStruct((B, N, dim), _STORE),
        grid=(B,),
        in_specs=in_specs,
        out_specs=pl.BlockSpec((1, N, dim), lambda b: (b, 0, 0)),
        scratch_shapes=[pltpu.VMEM((3 * heads, N, dim_head), _STORE),
                        pltpu.VMEM((N, dim), jnp.float32)],
        compiler_params=pltpu.CompilerParams(
            dimension_semantics=("parallel",),
            vmem_limit_bytes=_vmem_limit_bytes(ws)),
    )(x, lp["attn_ln_g"], lp["attn_ln_b"], lp["w_qkv"], wo3, lp["b_out"],
      lp["ffn_ln_g"], lp["ffn_ln_b"], lp["w1"], lp["b1"], lp["w2"], lp["b2"])


# --------------------------- model-level plumbing ---------------------------

def extract_patches(video, ph, pw, pf):
    # einops: 'b c (h p1) (w p2) (f pf) -> b (h w f) (p1 p2 pf c)'
    B, C, H, W, D = video.shape
    h, w, f = H // ph, W // pw, D // pf
    x = video.reshape(B, C, h, ph, w, pw, f, pf)
    x = jnp.transpose(x, (0, 2, 4, 6, 3, 5, 7, 1))          # (B,h,w,f,p1,p2,pf,C)
    return x.reshape(B, h * w * f, ph * pw * pf * C)


def position_embedding_3d(params, B, h, w, d):
    # PositionEmbeddingLearned3d.forward (RadFM): embedding lookup + broadcast.
    Hp, Wp, Dp = params["row"].shape[0], params["col"].shape[0], params["dep"].shape[0]
    i = (jnp.arange(h) + 1) * (Hp // h) - 1
    j = (jnp.arange(w) + 1) * (Wp // w) - 1
    k = (jnp.arange(d) + 1) * (Dp // d) - 1
    dpos = params["row"].shape[1]
    x_emb = jnp.broadcast_to(params["row"][i][:, None, None, :], (h, w, d, dpos))
    y_emb = jnp.broadcast_to(params["col"][j][None, :, None, :], (h, w, d, dpos))
    z_emb = jnp.broadcast_to(params["dep"][k][None, None, :, :], (h, w, d, dpos))
    pos = jnp.concatenate([x_emb, y_emb, z_emb], axis=-1).reshape(h * w * d, 3 * dpos)
    return jnp.broadcast_to(pos[None], (B, h * w * d, 3 * dpos))


def vit_expert_forward(video, expert, params, cfg):
    B = video.shape[0]
    ph, pw, pf = cfg["patch_h"], cfg["patch_w"], cfg["frame_patch"]
    h, w, d = video.shape[2] // ph, video.shape[3] // pw, video.shape[4] // pf

    patches = extract_patches(video, ph, pw, pf)                  # (B, n, patch_dim) f32
    pos = position_embedding_3d(params["pos"], B, h, w, d)        # (B, n, dim) f32
    x = run_patch_embed(patches, pos.astype(_STORE), params["patch"])  # bf16, +pos

    expert_rep = jnp.broadcast_to(expert, (B,) + expert.shape[1:]).astype(_STORE)
    x = jnp.concatenate([expert_rep, x], axis=1)                  # expert tokens first
    n_tok = x.shape[1]

    # Pad token axis to a lane-dense multiple of 128; padded keys are masked
    # with -inf in-kernel and padded rows are dropped afterwards.
    n_pad = -(-n_tok // 128) * 128
    if n_pad != n_tok:
        x = jnp.pad(x, ((0, 0), (0, n_pad - n_tok), (0, 0)))

    # emb_dropout / dropout are identity (p = 0, eval semantics)
    for lp in params["layers"]:
        x = run_layer(x, lp, cfg["heads"], cfg["dim_head"], n_valid=n_tok)

    return x[:, :n_tok], pos


# ------------------------------ params init ---------------------------------

def init_params(key, *, channels, ph, pw, pf, dim, depth, heads, dim_head,
                mlp_dim, Hp, Wp, Dp):
    assert dim % 3 == 0, "dim must be divisible by 3 so pos-embedding matches dim"
    patch_dim = channels * ph * pw * pf
    inner = heads * dim_head
    keys = jax.random.split(key, 8 + depth * 4)
    ki = iter(keys)

    def nrm(k, shape, std=0.02):
        return (std * jax.random.normal(k, shape, jnp.float32)).astype(_STORE)

    params = {
        "patch": {
            "ln1_g": jnp.ones((1, patch_dim), jnp.float32),
            "ln1_b": jnp.zeros((1, patch_dim), jnp.float32),
            "w": nrm(next(ki), (patch_dim, dim)),
            "b": jnp.zeros((1, dim), jnp.float32),
            "ln2_g": jnp.ones((1, dim), jnp.float32),
            "ln2_b": jnp.zeros((1, dim), jnp.float32),
        },
        "pos": {  # nn.Embedding weights, uniform init as in reset_parameters()
            "row": jax.random.uniform(next(ki), (Hp, dim // 3), jnp.float32),
            "col": jax.random.uniform(next(ki), (Wp, dim // 3), jnp.float32),
            "dep": jax.random.uniform(next(ki), (Dp, dim // 3), jnp.float32),
        },
        "layers": [],
    }
    for _ in range(depth):
        params["layers"].append({
            "attn_ln_g": jnp.ones((1, dim), jnp.float32),
            "attn_ln_b": jnp.zeros((1, dim), jnp.float32),
            "w_qkv": nrm(next(ki), (dim, 3 * inner)),     # to_qkv (bias=False)
            "w_out": nrm(next(ki), (inner, dim)),
            "b_out": jnp.zeros((1, dim), jnp.float32),
            "ffn_ln_g": jnp.ones((1, dim), jnp.float32),
            "ffn_ln_b": jnp.zeros((1, dim), jnp.float32),
            "w1": nrm(next(ki), (dim, mlp_dim)),
            "b1": jnp.zeros((1, mlp_dim), jnp.float32),
            "w2": nrm(next(ki), (mlp_dim, dim)),
            "b2": jnp.zeros((1, dim), jnp.float32),
        })
    return params


# ---------------------------------- main -------------------------------------

if __name__ == "__main__":
    # Small, lane/MXU-aligned configuration:
    #   patch_dim = 4*4*2*4 = 128, dim = 384, dim_head = 128, mlp = 768,
    #   tokens = 16 expert + 64 patches = 80 -> padded to 128 in the layers.
    B, C, H, W, D = 2, 4, 16, 16, 8
    ph, pw, pf = 4, 4, 2                      # image_patch_size=(4,4), frame_patch_size=2
    dim, depth, heads, dim_head, mlp_dim = 384, 2, 3, 128, 768
    n_expert = 16

    cfg = dict(patch_h=ph, patch_w=pw, frame_patch=pf,
               heads=heads, dim_head=dim_head)

    key = jax.random.PRNGKey(0)
    k_vid, k_exp, k_par = jax.random.split(key, 3)
    video = jax.random.normal(k_vid, (B, C, H, W, D), jnp.float32)
    expert = jax.random.normal(k_exp, (1, n_expert, dim), jnp.float32)

    params = init_params(
        k_par, channels=C, ph=ph, pw=pw, pf=pf, dim=dim, depth=depth,
        heads=heads, dim_head=dim_head, mlp_dim=mlp_dim,
        Hp=H // ph, Wp=W // pw, Dp=D // pf)

    x_out, pos_out = vit_expert_forward(video, expert, params, cfg)
    jax.block_until_ready(x_out)
    jax.block_until_ready(pos_out)

    n_patches = (H // ph) * (W // pw) * (D // pf)
    assert x_out.shape == (B, n_expert + n_patches, dim)
    assert pos_out.shape == (B, n_patches, dim)
    assert bool(jnp.all(jnp.isfinite(x_out.astype(jnp.float32))))
    assert bool(jnp.all(jnp.isfinite(pos_out)))
    print("KERNEL_OK")
</pallas_src>

<mosaic_0001>
module attributes {stable_mosaic.version = 11 : i64} {
  func.func @patch_embed_kernel(%arg0: i32, %arg1: i32, %arg2: memref<1x64x128xf32, #tpu.memory_space<vmem>>, %arg3: memref<1x64x384xbf16, #tpu.memory_space<vmem>>, %arg4: memref<1x128xf32, #tpu.memory_space<vmem>>, %arg5: memref<1x128xf32, #tpu.memory_space<vmem>>, %arg6: memref<128x384xbf16, #tpu.memory_space<vmem>>, %arg7: memref<1x384xf32, #tpu.memory_space<vmem>>, %arg8: memref<1x384xf32, #tpu.memory_space<vmem>>, %arg9: memref<1x384xf32, #tpu.memory_space<vmem>>, %arg10: memref<1x64x384xbf16, #tpu.memory_space<vmem>>) attributes {dimension_semantics = [#tpu.dimension_semantics<parallel>, #tpu.dimension_semantics<parallel>], iteration_bounds = array<i64: 2, 1>, scalar_prefetch = 0 : i64, scratch_operands = 0 : i64, tpu.core_type = #tpu.core_type<tc>, window_params = [{transform_indices = @transform_0, window_bounds = array<i64: 1, 64, 128>}, {transform_indices = @transform_1, window_bounds = array<i64: 1, 64, 384>}, {pipeline_mode = #tpu.pipeline_mode<synchronous>, transform_indices = @transform_2, window_bounds = array<i64: 1, 128>}, {pipeline_mode = #tpu.pipeline_mode<synchronous>, transform_indices = @transform_3, window_bounds = array<i64: 1, 128>}, {pipeline_mode = #tpu.pipeline_mode<synchronous>, transform_indices = @transform_4, window_bounds = array<i64: 128, 384>}, {pipeline_mode = #tpu.pipeline_mode<synchronous>, transform_indices = @transform_5, window_bounds = array<i64: 1, 384>}, {pipeline_mode = #tpu.pipeline_mode<synchronous>, transform_indices = @transform_6, window_bounds = array<i64: 1, 384>}, {pipeline_mode = #tpu.pipeline_mode<synchronous>, transform_indices = @transform_7, window_bounds = array<i64: 1, 384>}, {transform_indices = @transform_8, window_bounds = array<i64: 1, 64, 384>}]} {
    %c0 = arith.constant 0 : index
    %c0_0 = arith.constant 0 : index
    %c0_1 = arith.constant 0 : index
    %0 = vector.load %arg2[%c0, %c0_0, %c0_1] : memref<1x64x128xf32, #tpu.memory_space<vmem>>, vector<1x64x128xf32>
    %1 = vector.shape_cast %0 : vector<1x64x128xf32> to vector<64x128xf32>
    %c0_2 = arith.constant 0 : index
    %c0_3 = arith.constant 0 : index
    %2 = vector.load %arg4[%c0_2, %c0_3] : memref<1x128xf32, #tpu.memory_space<vmem>>, vector<1x128xf32>
    %c0_4 = arith.constant 0 : index
    %c0_5 = arith.constant 0 : index
    %3 = vector.load %arg5[%c0_4, %c0_5] : memref<1x128xf32, #tpu.memory_space<vmem>>, vector<1x128xf32>
    %cst = arith.constant dense<0.000000e+00> : vector<64xf32>
    %4 = vector.multi_reduction <add>, %1, %cst [1] : vector<64x128xf32> to vector<64xf32>
    %5 = vector.shape_cast %4 : vector<64xf32> to vector<64x1xf32>
    %cst_6 = arith.constant 1.280000e+02 : f32
    %6 = vector.broadcast %cst_6 : f32 to vector<64x1xf32>
    %7 = arith.divf %5, %6 : vector<64x1xf32>
    %8 = vector.broadcast %7 : vector<64x1xf32> to vector<64x128xf32>
    %9 = arith.subf %1, %8 : vector<64x128xf32>
    %10 = arith.mulf %9, %9 : vector<64x128xf32>
    %cst_7 = arith.constant dense<0.000000e+00> : vector<64xf32>
    %11 = vector.multi_reduction <add>, %10, %cst_7 [1] : vector<64x128xf32> to vector<64xf32>
    %12 = vector.shape_cast %11 : vector<64xf32> to vector<64x1xf32>
    %cst_8 = arith.constant 1.280000e+02 : f32
    %13 = vector.broadcast %cst_8 : f32 to vector<64x1xf32>
    %14 = arith.divf %12, %13 : vector<64x1xf32>
    %15 = vector.broadcast %7 : vector<64x1xf32> to vector<64x128xf32>
    %16 = arith.subf %1, %15 : vector<64x128xf32>
    %cst_9 = arith.constant 9.99999974E-6 : f32
    %17 = vector.broadcast %cst_9 : f32 to vector<64x1xf32>
    %18 = arith.addf %14, %17 : vector<64x1xf32>
    %19 = math.rsqrt %18 : vector<64x1xf32>
    %20 = vector.broadcast %19 : vector<64x1xf32> to vector<64x128xf32>
    %21 = arith.mulf %16, %20 : vector<64x128xf32>
    %22 = vector.broadcast %2 : vector<1x128xf32> to vector<64x128xf32>
    %23 = arith.mulf %21, %22 : vector<64x128xf32>
    %24 = vector.broadcast %3 : vector<1x128xf32> to vector<64x128xf32>
    %25 = arith.addf %23, %24 : vector<64x128xf32>
    %26 = arith.truncf %25 : vector<64x128xf32> to vector<64x128xbf16>
    %c0_10 = arith.constant 0 : index
    %c0_11 = arith.constant 0 : index
    %27 = vector.load %arg6[%c0_10, %c0_11] : memref<128x384xbf16, #tpu.memory_space<vmem>>, vector<128x384xbf16>
    %cst_12 = arith.constant dense<0.000000e+00> : vector<64x384xf32>
    %28 = tpu.matmul %26, %27, %cst_12 {dimension_numbers = #tpu.dot_dimension_numbers<[1], [0], [0], [1], [0, 0, 1, 1], [], []>} : vector<64x128xbf16>, vector<128x384xbf16>, vector<64x384xf32> -> vector<64x384xf32>
    %c0_13 = arith.constant 0 : index
    %c0_14 = arith.constant 0 : index
    %29 = vector.load %arg7[%c0_13, %c0_14] : memref<1x384xf32, #tpu.memory_space<vmem>>, vector<1x384xf32>
    %30 = vector.broadcast %29 : vector<1x384xf32> to vector<64x384xf32>
    %31 = arith.addf %28, %30 : vector<64x384xf32>
    %c0_15 = arith.constant 0 : index
    %c0_16 = arith.constant 0 : index
    %32 = vector.load %arg8[%c0_15, %c0_16] : memref<1x384xf32, #tpu.memory_space<vmem>>, vector<1x384xf32>
    %c0_17 = arith.constant 0 : index
    %c0_18 = arith.constant 0 : index
    %33 = vector.load %arg9[%c0_17, %c0_18] : memref<1x384xf32, #tpu.memory_space<vmem>>, vector<1x384xf32>
    %cst_19 = arith.constant dense<0.000000e+00> : vector<64xf32>
    %34 = vector.multi_reduction <add>, %31, %cst_19 [1] : vector<64x384xf32> to vector<64xf32>
    %35 = vector.shape_cast %34 : vector<64xf32> to vector<64x1xf32>
    %cst_20 = arith.constant 3.840000e+02 : f32
    %36 = vector.broadcast %cst_20 : f32 to vector<64x1xf32>
    %37 = arith.divf %35, %36 : vector<64x1xf32>
    %38 = vector.broadcast %37 : vector<64x1xf32> to vector<64x384xf32>
    %39 = arith.subf %31, %38 : vector<64x384xf32>
    %40 = arith.mulf %39, %39 : vector<64x384xf32>
    %cst_21 = arith.constant dense<0.000000e+00> : vector<64xf32>
    %41 = vector.multi_reduction <add>, %40, %cst_21 [1] : vector<64x384xf32> to vector<64xf32>
    %42 = vector.shape_cast %41 : vector<64xf32> to vector<64x1xf32>
    %cst_22 = arith.constant 3.840000e+02 : f32
    %43 = vector.broadcast %cst_22 : f32 to vector<64x1xf32>
    %44 = arith.divf %42, %43 : vector<64x1xf32>
    %45 = vector.broadcast %37 : vector<64x1xf32> to vector<64x384xf32>
    %46 = arith.subf %31, %45 : vector<64x384xf32>
    %cst_23 = arith.constant 9.99999974E-6 : f32
    %47 = vector.broadcast %cst_23 : f32 to vector<64x1xf32>
    %48 = arith.addf %44, %47 : vector<64x1xf32>
    %49 = math.rsqrt %48 : vector<64x1xf32>
    %50 = vector.broadcast %49 : vector<64x1xf32> to vector<64x384xf32>
    %51 = arith.mulf %46, %50 : vector<64x384xf32>
    %52 = vector.broadcast %32 : vector<1x384xf32> to vector<64x384xf32>
    %53 = arith.mulf %51, %52 : vector<64x384xf32>
    %54 = vector.broadcast %33 : vector<1x384xf32> to vector<64x384xf32>
    %55 = arith.addf %53, %54 : vector<64x384xf32>
    %c0_24 = arith.constant 0 : index
    %c0_25 = arith.constant 0 : index
    %c0_26 = arith.constant 0 : index
    %56 = vector.load %arg3[%c0_24, %c0_25, %c0_26] : memref<1x64x384xbf16, #tpu.memory_space<vmem>>, vector<1x64x384xbf16>
    %57 = vector.shape_cast %56 : vector<1x64x384xbf16> to vector<64x384xbf16>
    %58 = arith.extf %57 : vector<64x384xbf16> to vector<64x384xf32>
    %59 = arith.addf %55, %58 : vector<64x384xf32>
    %60 = arith.truncf %59 : vector<64x384xf32> to vector<64x384xbf16>
    %c0_27 = arith.constant 0 : index
    %c0_28 = arith.constant 0 : index
    %c0_29 = arith.constant 0 : index
    %61 = vector.load %arg10[%c0_27, %c0_28, %c0_29] : memref<1x64x384xbf16, #tpu.memory_space<vmem>>, vector<1x64x384xbf16>
    %62 = vector.shape_cast %61 : vector<1x64x384xbf16> to vector<64x384xbf16>
    %63 = vector.shape_cast %60 : vector<64x384xbf16> to vector<1x64x384xbf16>
    tpu.vector_store %arg10[%c0_27, %c0_28, %c0_29], %63 {strides = array<i32>} : memref<1x64x384xbf16, #tpu.memory_space<vmem>>, vector<1x64x384xbf16>,
    return
  }
  func.func @transform_0(%arg0: i32, %arg1: i32) -> (i32, i32, i32) {
    %c0_i32 = arith.constant 0 : i32
    %c0_i32_0 = arith.constant 0 : i32
    return %arg0, %arg1, %c0_i32 : i32, i32, i32
  }
  func.func @transform_1(%arg0: i32, %arg1: i32) -> (i32, i32, i32) {
    %c0_i32 = arith.constant 0 : i32
    %c0_i32_0 = arith.constant 0 : i32
    return %arg0, %arg1, %c0_i32 : i32, i32, i32
  }
  func.func @transform_2(%arg0: i32, %arg1: i32) -> (i32, i32) {
    %c0_i32 = arith.constant 0 : i32
    %c0_i32_0 = arith.constant 0 : i32
    %c0_i32_1 = arith.constant 0 : i32
    return %c0_i32, %c0_i32_0 : i32, i32
  }
  func.func @transform_3(%arg0: i32, %arg1: i32) -> (i32, i32) {
    %c0_i32 = arith.constant 0 : i32
    %c0_i32_0 = arith.constant 0 : i32
    %c0_i32_1 = arith.constant 0 : i32
    return %c0_i32, %c0_i32_0 : i32, i32
  }
  func.func @transform_4(%arg0: i32, %arg1: i32) -> (i32, i32) {
    %c0_i32 = arith.constant 0 : i32
    %c0_i32_0 = arith.constant 0 : i32
    %c0_i32_1 = arith.constant 0 : i32
    return %c0_i32, %c0_i32_0 : i32, i32
  }
  func.func @transform_5(%arg0: i32, %arg1: i32) -> (i32, i32) {
    %c0_i32 = arith.constant 0 : i32
    %c0_i32_0 = arith.constant 0 : i32
    %c0_i32_1 = arith.constant 0 : i32
    return %c0_i32, %c0_i32_0 : i32, i32
  }
  func.func @transform_6(%arg0: i32, %arg1: i32) -> (i32, i32) {
    %c0_i32 = arith.constant 0 : i32
    %c0_i32_0 = arith.constant 0 : i32
    %c0_i32_1 = arith.constant 0 : i32
    return %c0_i32, %c0_i32_0 : i32, i32
  }
  func.func @transform_7(%arg0: i32, %arg1: i32) -> (i32, i32) {
    %c0_i32 = arith.constant 0 : i32
    %c0_i32_0 = arith.constant 0 : i32
    %c0_i32_1 = arith.constant 0 : i32
    return %c0_i32, %c0_i32_0 : i32, i32
  }
  func.func @transform_8(%arg0: i32, %arg1: i32) -> (i32, i32, i32) {
    %c0_i32 = arith.constant 0 : i32
    %c0_i32_0 = arith.constant 0 : i32
    return %arg0, %arg1, %c0_i32 : i32, i32, i32
  }
}

</mosaic_0001>

<llo_original>
// kernel: tpu_custom_call.1
$region0: #{tpu_custom_call.1}
  #allocation0 [shape = 'u32[]', space=smem, size = 0x4, offset = 0x4, fixed_abs, tag = 'smem constant byte address 0x4 - core index']
  #allocation1 [shape = 'u32[72,128]{1,0:T(1,128)}', space=vmem, size = 0x9000, scoped, tag = 'internal scratch']
  %s0 = inlined_call_operand.hbm [shape: f32[2,64,128], index: 0, kind: input, shape index: {}]
  %s1 = inlined_call_operand.hbm [shape: bf16[2,64,384], index: 1, kind: input, shape index: {}]
  %s2 = inlined_call_operand.hbm [shape: f32[1,128], index: 2, kind: input, shape index: {}]
  %s3 = inlined_call_operand.hbm [shape: f32[1,128], index: 3, kind: input, shape index: {}]
  %s4 = inlined_call_operand.hbm [shape: bf16[128,384], index: 4, kind: input, shape index: {}]
  %s5 = inlined_call_operand.vmem [shape: f32[1,384], index: 5, kind: input, shape index: {}]
  %s6 = inlined_call_operand.hbm [shape: f32[1,384], index: 6, kind: input, shape index: {}]
  %s7 = inlined_call_operand.vmem [shape: f32[1,384], index: 7, kind: input, shape index: {}]
  %s8 = inlined_call_operand.hbm [shape: bf16[2,64,384], index: 8, kind: output, shape index: {}]
  %s9 = sld [smem:[#allocation0]]
  $region89: #{tpu_custom_call.1} parent=0
    _
  %s11 = ssub.s32 1, %s9
  %s12 = scalar_select 0, %s11, %s9
  $region1: #{tpu_custom_call.1} parent=0
    #allocation2 [shape = 'u8[65536]{0}', space=vmem, size = 0x10000, scoped, tag = 'input window, operand 0']
    #allocation3 [shape = 's32[2]{0}', space=sflag, size = 0x8, scoped, tag = 'scoped memory for tpu_custom_call.1']
    #allocation4 [shape = 's32[2]{0}', space=sflag, size = 0x8, scoped, tag = 'scoped memory for tpu_custom_call.1']
    #allocation5 [shape = 'u8[98304]{0}', space=vmem, size = 0x18000, scoped, tag = 'input window, operand 1']
    #allocation6 [shape = 's32[2]{0}', space=sflag, size = 0x8, scoped, tag = 'scoped memory for tpu_custom_call.1']
    #allocation7 [shape = 'u8[512]{0}', space=vmem, size = 0x400, scoped, tag = 'input window, operand 2, single buffered']
    #allocation8 [shape = 'u8[512]{0}', space=vmem, size = 0x400, scoped, tag = 'input window, operand 3, single buffered']
    #allocation9 [shape = 's32[1]{0}', space=sflag, size = 0x4, scoped, tag = 'scoped memory for tpu_custom_call.1']
    #allocation10 [shape = 'u8[98304]{0}', space=vmem, size = 0x18000, scoped, tag = 'input window, operand 4, single buffered']
    #allocation11 [shape = 'u8[1536]{0}', space=vmem, size = 0x800, scoped, tag = 'input window, operand 6, single buffered']
    #allocation12 [shape = 's32[1]{0}', space=sflag, size = 0x4, scoped, tag = 'scoped memory for tpu_custom_call.1']
    #allocation13 [shape = 'u8[98304]{0}', space=vmem, size = 0x18000, scoped, tag = 'output window, operand 0']
    %13 = vsyncpa [#allocation3], 0
    %s14 = scalar_lea.sflag [#allocation3], 1
    %15 = vsyncpa %s14, 0
    %16 = vsyncpa [#allocation6], 0
    %s17 = scalar_lea.sflag [#allocation6], 1
    %18 = vsyncpa %s17, 0
    %19 = vsyncpa [#allocation9], 0
    %20 = vsyncpa [#allocation12], 0
    %21 = vsyncpa [#allocation4], 0
    %s22 = scalar_lea.sflag [#allocation4], 1
    %23 = vsyncpa %s22, 0
    loop: start=0, step=1, limit=4
    $region2: #{tpu_custom_call.1} parent=1 // loop_pre_header
      _
    $region3: #{tpu_custom_call.1} parent=1 // loop_header
      %s25 = sphi 0, %s29
      %p26 = scmp.ge.s32.totalorder %s25, 4
      %s32 = sphi 0, %s44
      %s33 = sphi 0, %s40
      %s34 = sphi 0, %s32
      %s35 = sphi 0, %s33
      %s36 = sphi 0, %s34
      %s37 = sphi 0, %s35
      %s49 = sphi 0, %s51
      %s52 = sphi 0, %s49
      %s53 = sphi 0, %s52
      %s69 = sphi 0, %s53
      %s77 = sphi 0, %s79
      %s80 = sphi 0, %s77
      %s81 = sphi 0, %s80
      %s97 = sphi 0, %s81
      %s101 = sphi 0, %s101
      %s103 = sphi 0, %s101
      %s104 = sphi 0, %s103
      %s118 = sphi 0, %s104
      %s122 = sphi 0, %s122
      %s124 = sphi 0, %s122
      %s125 = sphi 0, %s124
      %s139 = sphi 0, %s125
      %s143 = sphi 0, %s143
      %s145 = sphi 0, %s143
      %s146 = sphi 0, %s145
      %s160 = sphi 0, %s146
      %s164 = sphi 0, %s164
      %s166 = sphi 0, %s164
      %s167 = sphi 0, %s166
      %s181 = sphi 0, %s167
      %s185 = sphi 0, %s185
      %s187 = sphi 0, %s185
      %s188 = sphi 0, %s187
      %s202 = sphi 0, %s188
      %s206 = sphi 0, %s206
      %s208 = sphi 0, %s206
      %s209 = sphi 0, %s208
      %s223 = sphi 0, %s209
      %s231 = sphi 0, %s233
      %s234 = sphi 0, %s231
      %s235 = sphi 0, %s234
      %s251 = sphi 0, %s235
    $region4: #{tpu_custom_call.1} parent=1 // loop_header_branch
      %28 = sbr.rel (%p26) target = $region8
    $region5: #{tpu_custom_call.1} parent=1 // loop_body
      %s30 = ssub.s32 %s25, 1
      %s31 = ssub.s32 %s25, 2
      %s38 = sadd.s32 1, %s33
      %p39 = scmp.ge.s32.totalorder %s38, 1
      %s40 = scalar_select %p39, 0, %s38
      %s41 = sadd.s32 1, %s32
      %s42 = scalar_select %p39, %s41, %s32
      %p43 = scmp.ge.s32.totalorder %s42, 2
      %s44 = scalar_select %p43, 0, %s42
      %s45 = ssub.s32 %s32, %s44
      %s46 = ssub.s32 %s33, %s40
      %s47 = sor.u32 %s45, %s46
      %p48 = scmp.eq.s32.totalorder %s47, 0
      %s50 = sadd.s32 %s49, 1
      %s51 = scalar_select %p48, %s49, %s50
      %p54 = pneg %p48
      %p55 = scmp.eq.s32.totalorder %s25, 1
      %p56 = por %p54, %p55
      %p57 = scmp.ne.s32.totalorder %s49, %s52
      %p58 = scmp.eq.s32.totalorder %s25, 0
      %p59 = por %p57, %p58
      %p60 = scmp.ne.s32.totalorder %s49, %s52
      %p61 = scmp.eq.s32.totalorder %s30, 1
      %p62 = por %p60, %p61
      %p63 = scmp.ne.s32.totalorder %s52, %s53
      %p64 = scmp.eq.s32.totalorder %s30, 0
      %p65 = por %p63, %p64
      %p66 = scmp.ne.s32.totalorder %s52, %s53
      %p67 = scmp.eq.s32.totalorder %s31, 1
      %p68 = por %p66, %p67
      %p70 = scmp.ne.s32.totalorder %s53, %s69
      %p71 = scmp.eq.s32.totalorder %s31, 0
      %p72 = por %p70, %p71
      %s73 = ssub.s32 %s32, %s44
      %s74 = ssub.s32 %s33, %s40
      %s75 = sor.u32 %s73, %s74
      %p76 = scmp.eq.s32.totalorder %s75, 0
      %s78 = sadd.s32 %s77, 1
      %s79 = scalar_select %p76, %s77, %s78
      %p82 = pneg %p76
      %p83 = scmp.eq.s32.totalorder %s25, 1
      %p84 = por %p82, %p83
      %p85 = scmp.ne.s32.totalorder %s77, %s80
      %p86 = scmp.eq.s32.totalorder %s25, 0
      %p87 = por %p85, %p86
      %p88 = scmp.ne.s32.totalorder %s77, %s80
      %p89 = scmp.eq.s32.totalorder %s30, 1
      %p90 = por %p88, %p89
      %p91 = scmp.ne.s32.totalorder %s80, %s81
      %p92 = scmp.eq.s32.totalorder %s30, 0
      %p93 = por %p91, %p92
      %p94 = scmp.ne.s32.totalorder %s80, %s81
      %p95 = scmp.eq.s32.totalorder %s31, 1
      %p96 = por %p94, %p95
      %p98 = scmp.ne.s32.totalorder %s81, %s97
      %p99 = scmp.eq.s32.totalorder %s31, 0
      %p100 = por %p98, %p99
      %s102 = sadd.s32 %s101, 1
      %p105 = scmp.eq.s32.totalorder %s25, 1
      %p106 = scmp.ne.s32.totalorder %s101, %s103
      %p107 = scmp.eq.s32.totalorder %s25, 0
      %p108 = por %p106, %p107
      %p109 = scmp.ne.s32.totalorder %s101, %s103
      %p110 = scmp.eq.s32.totalorder %s30, 1
      %p111 = por %p109, %p110
      %p112 = scmp.ne.s32.totalorder %s103, %s104
      %p113 = scmp.eq.s32.totalorder %s30, 0
      %p114 = por %p112, %p113
      %p115 = scmp.ne.s32.totalorder %s103, %s104
      %p116 = scmp.eq.s32.totalorder %s31, 1
      %p117 = por %p115, %p116
      %p119 = scmp.ne.s32.totalorder %s104, %s118
      %p120 = scmp.eq.s32.totalorder %s31, 0
      %p121 = por %p119, %p120
      %s123 = sadd.s32 %s122, 1
      %p126 = scmp.eq.s32.totalorder %s25, 1
      %p127 = scmp.ne.s32.totalorder %s122, %s124
      %p128 = scmp.eq.s32.totalorder %s25, 0
      %p129 = por %p127, %p128
      %p130 = scmp.ne.s32.totalorder %s122, %s124
      %p131 = scmp.eq.s32.totalorder %s30, 1
      %p132 = por %p130, %p131
      %p133 = scmp.ne.s32.totalorder %s124, %s125
      %p134 = scmp.eq.s32.totalorder %s30, 0
      %p135 = por %p133, %p134
      %p136 = scmp.ne.s32.totalorder %s124, %s125
      %p137 = scmp.eq.s32.totalorder %s31, 1
      %p138 = por %p136, %p137
      %p140 = scmp.ne.s32.totalorder %s125, %s139
      %p141 = scmp.eq.s32.totalorder %s31, 0
      %p142 = por %p140, %p141
      %s144 = sadd.s32 %s143, 1
      %p147 = scmp.eq.s32.totalorder %s25, 1
      %p148 = scmp.ne.s32.totalorder %s143, %s145
      %p149 = scmp.eq.s32.totalorder %s25, 0
      %p150 = por %p148, %p149
      %p151 = scmp.ne.s32.totalorder %s143, %s145
      %p152 = scmp.eq.s32.totalorder %s30, 1
      %p153 = por %p151, %p152
      %p154 = scmp.ne.s32.totalorder %s145, %s146
      %p155 = scmp.eq.s32.totalorder %s30, 0
      %p156 = por %p154, %p155
      %p157 = scmp.ne.s32.totalorder %s145, %s146
      %p158 = scmp.eq.s32.totalorder %s31, 1
      %p159 = por %p157, %p158
      %p161 = scmp.ne.s32.totalorder %s146, %s160
      %p162 = scmp.eq.s32.totalorder %s31, 0
      %p163 = por %p161, %p162
      %s165 = sadd.s32 %s164, 1
      %p168 = scmp.eq.s32.totalorder %s25, 1
      %p169 = scmp.ne.s32.totalorder %s164, %s166
      %p170 = scmp.eq.s32.totalorder %s25, 0
      %p171 = por %p169, %p170
      %p172 = scmp.ne.s32.totalorder %s164, %s166
      %p173 = scmp.eq.s32.totalorder %s30, 1
      %p174 = por %p172, %p173
      %p175 = scmp.ne.s32.totalorder %s166, %s167
      %p176 = scmp.eq.s32.totalorder %s30, 0
      %p177 = por %p175, %p176
      %p178 = scmp.ne.s32.totalorder %s166, %s167
      %p179 = scmp.eq.s32.totalorder %s31, 1
      %p180 = por %p178, %p179
      %p182 = scmp.ne.s32.totalorder %s167, %s181
      %p183 = scmp.eq.s32.totalorder %s31, 0
      %p184 = por %p182, %p183
      %s186 = sadd.s32 %s185, 1
      %p189 = scmp.eq.s32.totalorder %s25, 1
      %p190 = scmp.ne.s32.totalorder %s185, %s187
      %p191 = scmp.eq.s32.totalorder %s25, 0
      %p192 = por %p190, %p191
      %p193 = scmp.ne.s32.totalorder %s185, %s187
      %p194 = scmp.eq.s32.totalorder %s30, 1
      %p195 = por %p193, %p194
      %p196 = scmp.ne.s32.totalorder %s187, %s188
      %p197 = scmp.eq.s32.totalorder %s30, 0
      %p198 = por %p196, %p197
      %p199 = scmp.ne.s32.totalorder %s187, %s188
      %p200 = scmp.eq.s32.totalorder %s31, 1
      %p201 = por %p199, %p200
      %p203 = scmp.ne.s32.totalorder %s188, %s202
      %p204 = scmp.eq.s32.totalorder %s31, 0
      %p205 = por %p203, %p204
      %s207 = sadd.s32 %s206, 1
      %p210 = scmp.eq.s32.totalorder %s25, 1
      %p211 = scmp.ne.s32.totalorder %s206, %s208
      %p212 = scmp.eq.s32.totalorder %s25, 0
      %p213 = por %p211, %p212
      %p214 = scmp.ne.s32.totalorder %s206, %s208
      %p215 = scmp.eq.s32.totalorder %s30, 1
      %p216 = por %p214, %p215
      %p217 = scmp.ne.s32.totalorder %s208, %s209
      %p218 = scmp.eq.s32.totalorder %s30, 0
      %p219 = por %p217, %p218
      %p220 = scmp.ne.s32.totalorder %s208, %s209
      %p221 = scmp.eq.s32.totalorder %s31, 1
      %p222 = por %p220, %p221
      %p224 = scmp.ne.s32.totalorder %s209, %s223
      %p225 = scmp.eq.s32.totalorder %s31, 0
      %p226 = por %p224, %p225
      %s227 = ssub.s32 %s32, %s44
      %s228 = ssub.s32 %s33, %s40
      %s229 = sor.u32 %s227, %s228
      %p230 = scmp.eq.s32.totalorder %s229, 0
      %s232 = sadd.s32 %s231, 1
      %s233 = scalar_select %p230, %s231, %s232
      %p236 = pneg %p230
      %p237 = scmp.eq.s32.totalorder %s25, 1
      %p238 = por %p236, %p237
      %p239 = scmp.ne.s32.totalorder %s231, %s234
      %p240 = scmp.eq.s32.totalorder %s25, 0
      %p241 = por %p239, %p240
      %p242 = scmp.ne.s32.totalorder %s231, %s234
      %p243 = scmp.eq.s32.totalorder %s30, 1
      %p244 = por %p242, %p243
      %p245 = scmp.ne.s32.totalorder %s234, %s235
      %p246 = scmp.eq.s32.totalorder %s30, 0
      %p247 = por %p245, %p246
      %p248 = scmp.ne.s32.totalorder %s234, %s235
      %p249 = scmp.eq.s32.totalorder %s31, 1
      %p250 = por %p248, %p249
      %p252 = scmp.ne.s32.totalorder %s235, %s251
      %p253 = scmp.eq.s32.totalorder %s31, 0
      %p254 = por %p252, %p253
      %p255 = scmp.le.s32.totalorder 1, %s25
      %p256 = scmp.lt.s32.totalorder %s25, 3
      %p257 = pnand %p255, %p256
      %p258 = pneg %p257
      // Predicated region
      $region9: #{tpu_custom_call.1} parent=5 // pred_check
        _
      $region10: #{tpu_custom_call.1} parent=5 // pred_check_branch
        %260 = sbr.rel (%p257) target = $region12
      $region11: #{tpu_custom_call.1} parent=5 // pred_region
        %s261 = ssub.s32 %s25, 1
        // Predicated region
        $region13: #{tpu_custom_call.1} parent=11 // pred_check
          %p262 = pneg %p114
        $region14: #{tpu_custom_call.1} parent=11 // pred_check_branch
          %264 = sbr.rel (%p262) target = $region16
        $region15: #{tpu_custom_call.1} parent=11 // pred_region
          %266 = vsyncadd [#allocation6], 0
          %s268 = sshll.u32 %s2, 4
          %s269 = int_to_ptr.hbm [resolvable:$true] %s268
          %s270 = sshll.u32 [#allocation7], 4
          %s271 = int_to_ptr.vmem [resolvable:$true] %s270
          %273 = dma.hbm_to_vmem [thread:$0]  %s269, 16, %s271, [#allocation6]
        $region16: #{tpu_custom_call.1} parent=11 // pred_fallthru
          _
        // Predicated region
        $region17: #{tpu_custom_call.1} parent=11 // pred_check
          %p274 = pneg %p135
        $region18: #{tpu_custom_call.1} parent=11 // pred_check_branch
          %276 = sbr.rel (%p274) target = $region20
        $region19: #{tpu_custom_call.1} parent=11 // pred_region
          %278 = vsyncadd [#allocation9], 0
          %s280 = sshll.u32 %s3, 4
          %s281 = int_to_ptr.hbm [resolvable:$true] %s280
          %s282 = sshll.u32 [#allocation8], 4
          %s283 = int_to_ptr.vmem [resolvable:$true] %s282
          %285 = dma.hbm_to_vmem [thread:$0]  %s281, 16, %s283, [#allocation9]
        $region20: #{tpu_custom_call.1} parent=11 // pred_fallthru
          _
        // Predicated region
        $region21: #{tpu_custom_call.1} parent=11 // pred_check
          %p286 = pneg %p156
        $region22: #{tpu_custom_call.1} parent=11 // pred_check_branch
          %288 = sbr.rel (%p286) target = $region24
        $region23: #{tpu_custom_call.1} parent=11 // pred_region
          %290 = vsyncadd [#allocation9], 0
          %s291 = sshll.u32 %s4, 4
          %s292 = int_to_ptr.hbm [resolvable:$true] %s291
          %s293 = sshll.u32 [#allocation10], 4
          %s294 = int_to_ptr.vmem [resolvable:$true] %s293
          %299 = dma.hbm_to_vmem [thread:$0]  %s292, 3072, %s294, [#allocation9], 192, 192, 12
        $region24: #{tpu_custom_call.1} parent=11 // pred_fallthru
          _
        // Predicated region
        $region25: #{tpu_custom_call.1} parent=11 // pred_check
          %p300 = pneg %p177
        $region26: #{tpu_custom_call.1} parent=11 // pred_check_branch
          %302 = sbr.rel (%p300) target = $region28
        $region27: #{tpu_custom_call.1} parent=11 // pred_region
          _
        $region28: #{tpu_custom_call.1} parent=11 // pred_fallthru
          _
        // Predicated region
        $region29: #{tpu_custom_call.1} parent=11 // pred_check
          %p303 = pneg %p198
        $region30: #{tpu_custom_call.1} parent=11 // pred_check_branch
          %305 = sbr.rel (%p303) target = $region32
        $region31: #{tpu_custom_call.1} parent=11 // pred_region
          %307 = vsyncadd [#allocation12], 0
          %s309 = sshll.u32 %s6, 4
          %s310 = int_to_ptr.hbm [resolvable:$true] %s309
          %s311 = sshll.u32 [#allocation11], 4
          %s312 = int_to_ptr.vmem [resolvable:$true] %s311
          %314 = dma.hbm_to_vmem [thread:$0]  %s310, 48, %s312, [#allocation12]
        $region32: #{tpu_custom_call.1} parent=11 // pred_fallthru
          _
        // Predicated region
        $region33: #{tpu_custom_call.1} parent=11 // pred_check
          %p315 = pneg %p219
        $region34: #{tpu_custom_call.1} parent=11 // pred_check_branch
          %317 = sbr.rel (%p315) target = $region36
        $region35: #{tpu_custom_call.1} parent=11 // pred_region
          _
        $region36: #{tpu_custom_call.1} parent=11 // pred_fallthru
          _
      $region12: #{tpu_custom_call.1} parent=5 // pred_fallthru
        _
      %p318 = scmp.lt.s32.totalorder %s25, 2
      // Predicated region
      $region37: #{tpu_custom_call.1} parent=5 // pred_check
        %p319 = pneg %p318
      $region38: #{tpu_custom_call.1} parent=5 // pred_check_branch
        %321 = sbr.rel (%p319) target = $region40
      $region39: #{tpu_custom_call.1} parent=5 // pred_region
        // Predicated region
        $region41: #{tpu_custom_call.1} parent=39 // pred_check
          %p322 = pneg %p59
        $region42: #{tpu_custom_call.1} parent=39 // pred_check_branch
          %324 = sbr.rel (%p322) target = $region44
        $region43: #{tpu_custom_call.1} parent=39 // pred_region
          %s325 = sand.u32 %s49, 1
          %s326 = scalar_lea.sflag [#allocation3], %s325
          %s327 = sand.u32 %s49, 1
          %s328 = smul.addr %s327, 64
          %s329 = scalar_lea.vmem [#allocation2], %s328
          %s330 = smul.u32 8, %s33
          %332 = vsyncadd %s326, 0
          %s333 = smul.addr %s32, 8
          %s334 = sadd.s32 %s330, %s333
          %s335 = smul.addr %s334, 8
          %s336 = scalar_lea.hbm %s0, %s335
          %s337 = sshll.u32 %s336, 4
          %s338 = int_to_ptr.hbm [resolvable:$true] %s337
          %s339 = sshll.u32 %s329, 4
          %s340 = int_to_ptr.vmem [resolvable:$true] %s339
          %345 = dma.hbm_to_vmem [thread:$0]  %s338, 1024, %s340, %s326, 128, 128, 8
        $region44: #{tpu_custom_call.1} parent=39 // pred_fallthru
          _
        // Predicated region
        $region45: #{tpu_custom_call.1} parent=39 // pred_check
          %p346 = pneg %p87
        $region46: #{tpu_custom_call.1} parent=39 // pred_check_branch
          %348 = sbr.rel (%p346) target = $region48
        $region47: #{tpu_custom_call.1} parent=39 // pred_region
          %s349 = sand.u32 %s25, 1
          %s350 = scalar_lea.sflag [#allocation6], %s349
          %s351 = sand.u32 %s77, 1
          %s352 = smul.addr %s351, 96
          %s353 = scalar_lea.vmem [#allocation5], %s352
          %s354 = smul.u32 8, %s33
          %356 = vsyncadd %s350, 0
          %s357 = smul.addr %s354, 3
          %s358 = smul.addr %s32, 24
          %s359 = sadd.s32 %s357, %s358
          %s360 = smul.addr %s359, 4
          %s361 = scalar_lea.hbm %s1, %s360
          %s362 = sshll.u32 %s361, 4
          %s363 = int_to_ptr.hbm [resolvable:$true] %s362
          %s364 = sshll.u32 %s353, 4
          %s365 = int_to_ptr.vmem [resolvable:$true] %s364
          %370 = dma.hbm_to_vmem [thread:$0]  %s363, 1536, %s365, %s350, 192, 192, 12
        $region48: #{tpu_custom_call.1} parent=39 // pred_fallthru
          _
      $region40: #{tpu_custom_call.1} parent=5 // pred_fallthru
        _
      %p371 = scmp.le.s32.totalorder 1, %s25
      %p372 = scmp.lt.s32.totalorder %s25, 3
      %p373 = pnand %p371, %p372
      %p374 = pneg %p373
      // Predicated region
      $region49: #{tpu_custom_call.1} parent=5 // pred_check
        _
      $region50: #{tpu_custom_call.1} parent=5 // pred_check_branch
        %376 = sbr.rel (%p373) target = $region52
      $region51: #{tpu_custom_call.1} parent=5 // pred_region
        %s377 = ssub.s32 %s25, 1
        %s378 = sand.u32 %s52, 1
        %s379 = scalar_lea.sflag [#allocation3], %s378
        %s380 = sand.u32 %s52, 1
        %s381 = smul.addr %s380, 64
        %s382 = scalar_lea.vmem [#allocation2], %s381
        // Predicated region
        $region53: #{tpu_custom_call.1} parent=51 // pred_check
          %p383 = pneg %p65
        $region54: #{tpu_custom_call.1} parent=51 // pred_check_branch
          %385 = sbr.rel (%p383) target = $region56
        $region55: #{tpu_custom_call.1} parent=51 // pred_region
          %387 = dma.done %s379, 1024
        $region56: #{tpu_custom_call.1} parent=51 // pred_fallthru
          _
        %s388 = sand.u32 %s30, 1
        %s389 = scalar_lea.sflag [#allocation6], %s388
        %s390 = sand.u32 %s80, 1
        %s391 = smul.addr %s390, 96
        %s392 = scalar_lea.vmem [#allocation5], %s391
        // Predicated region
        $region57: #{tpu_custom_call.1} parent=51 // pred_check
          %p393 = pneg %p93
        $region58: #{tpu_custom_call.1} parent=51 // pred_check_branch
          %395 = sbr.rel (%p393) target = $region60
        $region59: #{tpu_custom_call.1} parent=51 // pred_region
          %397 = dma.done %s389, 1536
        $region60: #{tpu_custom_call.1} parent=51 // pred_fallthru
          _
        // Predicated region
        $region61: #{tpu_custom_call.1} parent=51 // pred_check
          %p398 = pneg %p114
        $region62: #{tpu_custom_call.1} parent=51 // pred_check_branch
          %400 = sbr.rel (%p398) target = $region64
        $region63: #{tpu_custom_call.1} parent=51 // pred_region
          %402 = dma.done [#allocation6], 16
        $region64: #{tpu_custom_call.1} parent=51 // pred_fallthru
          _
        // Predicated region
        $region65: #{tpu_custom_call.1} parent=51 // pred_check
          %p403 = pneg %p135
        $region66: #{tpu_custom_call.1} parent=51 // pred_check_branch
          %405 = sbr.rel (%p403) target = $region68
        $region67: #{tpu_custom_call.1} parent=51 // pred_region
          %407 = dma.done [#allocation9], 16
        $region68: #{tpu_custom_call.1} parent=51 // pred_fallthru
          _
        // Predicated region
        $region69: #{tpu_custom_call.1} parent=51 // pred_check
          %p408 = pneg %p156
        $region70: #{tpu_custom_call.1} parent=51 // pred_check_branch
          %410 = sbr.rel (%p408) target = $region72
        $region71: #{tpu_custom_call.1} parent=51 // pred_region
          %412 = dma.done [#allocation9], 3072
        $region72: #{tpu_custom_call.1} parent=51 // pred_fallthru
          _
        // Predicated region
        $region73: #{tpu_custom_call.1} parent=51 // pred_check
          %p413 = pneg %p198
        $region74: #{tpu_custom_call.1} parent=51 // pred_check_branch
          %415 = sbr.rel (%p413) target = $region76
        $region75: #{tpu_custom_call.1} parent=51 // pred_region
          %417 = dma.done [#allocation12], 48
        $region76: #{tpu_custom_call.1} parent=51 // pred_fallthru
          _
        %s418 = sand.u32 %s52, 1
        %s419 = scalar_lea.sflag [#allocation3], %s418
        %s420 = sand.u32 %s52, 1
        %s421 = smul.addr %s420, 64
        %s422 = scalar_lea.vmem [#allocation2], %s421
        %p423 = pneg %p65
        %p424 = pneg %p62
        %s425 = sand.u32 %s30, 1
        %s426 = scalar_lea.sflag [#allocation6], %s425
        %s427 = sand.u32 %s80, 1
        %s428 = smul.addr %s427, 96
        %s429 = scalar_lea.vmem [#allocation5], %s428
        %p430 = pneg %p93
        %p431 = pneg %p90
        %p432 = pneg %p114
        %p433 = pneg %p111
        %p434 = pneg %p135
        %p435 = pneg %p132
        %p436 = pneg %p156
        %p437 = pneg %p153
        %p438 = pneg %p177
        %p439 = pneg %p174
        %p440 = pneg %p198
        %p441 = pneg %p195
        %p442 = pneg %p219
        %p443 = pneg %p216
        %p444 = pneg %p247
        %p445 = pneg %p244
        %s446 = sand.u32 %s234, 1
        %s447 = scalar_lea.sflag [#allocation4], %s446
        %s448 = sand.u32 %s234, 1
        %s449 = smul.addr %s448, 96
        %s450 = scalar_lea.vmem [#allocation13], %s449
        %s451 = smul.u32 8, %s35
        %s452 = smul.u32 8, %s35
        %s453 = smul.u32 8, %s35
        %v454 = vld [vmem:[%s382] sm:$0xff]
        %v455 = vld [vmem:[%s382 + $0x8] sm:$0xff]
        %v456 = vld [vmem:[%s382 + $0x10] sm:$0xff]
        %v457 = vld [vmem:[%s382 + $0x18] sm:$0xff]
        %v458 = vld [vmem:[%s382 + $0x20] sm:$0xff]
        %v459 = vld [vmem:[%s382 + $0x28] sm:$0xff]
        %v460 = vld [vmem:[%s382 + $0x30] sm:$0xff]
        %v461 = vld [vmem:[%s382 + $0x38] sm:$0xff]
        %v462 = vld [vmem:[#allocation7] sm:$0x1]
        %v463 = vld [vmem:[#allocation8] sm:$0x1]
        %464 = vadd.xlane.f32.xlu0 %v454
        %v465 = vpop.xlane.xlu0 %464
        %466 = vadd.xlane.f32.xlu0 %v455
        %v467 = vpop.xlane.xlu0 %466
        %468 = vadd.xlane.f32.xlu0 %v456
        %v469 = vpop.xlane.xlu0 %468
        %470 = vadd.xlane.f32.xlu0 %v457
        %v471 = vpop.xlane.xlu0 %470
        %472 = vadd.xlane.f32.xlu0 %v458
        %v473 = vpop.xlane.xlu0 %472
        %474 = vadd.xlane.f32.xlu0 %v459
        %v475 = vpop.xlane.xlu0 %474
        %476 = vadd.xlane.f32.xlu0 %v460
        %v477 = vpop.xlane.xlu0 %476
        %478 = vadd.xlane.f32.xlu0 %v461
        %v479 = vpop.xlane.xlu0 %478
        %v480 = vrcp.pop 128.0
        %v481 = vmul.f32 128.0, %v480
        %v482 = vsub.f32 1.0, %v481
        %v483 = vmul.f32 %v480, %v482
        %v484 = vadd.f32 %v480, %v483
        %vm485 = vweird.f32 %v480
        %v486 = vsel %vm485, %v480, %v484
        %v487 = vmul.f32 %v465, %v486
        %v488 = vmul.f32 %v467, %v486
        %v489 = vmul.f32 %v469, %v486
        %v490 = vmul.f32 %v471, %v486
        %v491 = vmul.f32 %v473, %v486
        %v492 = vmul.f32 %v475, %v486
        %v493 = vmul.f32 %v477, %v486
        %v494 = vmul.f32 %v479, %v486
        %v495 = vsub.f32 %v454, %v487
        %v496 = vsub.f32 %v455, %v488
        %v497 = vsub.f32 %v456, %v489
        %v498 = vsub.f32 %v457, %v490
        %v499 = vsub.f32 %v458, %v491
        %v500 = vsub.f32 %v459, %v492
        %v501 = vsub.f32 %v460, %v493
        %v502 = vsub.f32 %v461, %v494
        %v503 = vmul.f32 %v495, %v495
        %v504 = vmul.f32 %v496, %v496
        %v505 = vmul.f32 %v497, %v497
        %v506 = vmul.f32 %v498, %v498
        %v507 = vmul.f32 %v499, %v499
        %v508 = vmul.f32 %v500, %v500
        %v509 = vmul.f32 %v501, %v501
        %v510 = vmul.f32 %v502, %v502
        %511 = vadd.xlane.f32.xlu0 %v503
        %v512 = vpop.xlane.xlu0 %511
        %513 = vadd.xlane.f32.xlu0 %v504
        %v514 = vpop.xlane.xlu0 %513
        %515 = vadd.xlane.f32.xlu0 %v505
        %v516 = vpop.xlane.xlu0 %515
        %517 = vadd.xlane.f32.xlu0 %v506
        %v518 = vpop.xlane.xlu0 %517
        %519 = vadd.xlane.f32.xlu0 %v507
        %v520 = vpop.xlane.xlu0 %519
        %521 = vadd.xlane.f32.xlu0 %v508
        %v522 = vpop.xlane.xlu0 %521
        %523 = vadd.xlane.f32.xlu0 %v509
        %v524 = vpop.xlane.xlu0 %523
        %525 = vadd.xlane.f32.xlu0 %v510
        %v526 = vpop.xlane.xlu0 %525
        %v527 = vmul.f32 %v512, %v486
        %v528 = vmul.f32 %v514, %v486
        %v529 = vmul.f32 %v516, %v486
        %v530 = vmul.f32 %v518, %v486
        %v531 = vmul.f32 %v520, %v486
        %v532 = vmul.f32 %v522, %v486
        %v533 = vmul.f32 %v524, %v486
        %v534 = vmul.f32 %v526, %v486
        %v535 = vadd.f32 %v527, 1e-05
        %v536 = vadd.f32 %v528, 1e-05
        %v537 = vadd.f32 %v529, 1e-05
        %v538 = vadd.f32 %v530, 1e-05
        %v539 = vadd.f32 %v531, 1e-05
        %v540 = vadd.f32 %v532, 1e-05
        %v541 = vadd.f32 %v533, 1e-05
        %v542 = vadd.f32 %v534, 1e-05
        %v543 = vrsqrt.pop %v535
        %v544 = vmul.f32 %v543, %v535
        %v545 = vmul.f32 %v544, %v543
        %v546 = vmul.f32 0.5, %v545
        %v547 = vsub.f32 1.5, %v546
        %v548 = vmul.f32 %v543, %v547
        %vm549 = vweird.f32 %v535
        %vm550 = vweird.f32 %v543
        %vm551 = vmor %vm549, %vm550
        %v552 = vsel %vm551, %v543, %v548
        %v553 = vrsqrt.pop %v536
        %v554 = vmul.f32 %v553, %v536
        %v555 = vmul.f32 %v554, %v553
        %v556 = vmul.f32 0.5, %v555
        %v557 = vsub.f32 1.5, %v556
        %v558 = vmul.f32 %v553, %v557
        %vm559 = vweird.f32 %v536
        %vm560 = vweird.f32 %v553
        %vm561 = vmor %vm559, %vm560
        %v562 = vsel %vm561, %v553, %v558
        %v563 = vrsqrt.pop %v537
        %v564 = vmul.f32 %v563, %v537
        %v565 = vmul.f32 %v564, %v563
        %v566 = vmul.f32 0.5, %v565
        %v567 = vsub.f32 1.5, %v566
        %v568 = vmul.f32 %v563, %v567
        %vm569 = vweird.f32 %v537
        %vm570 = vweird.f32 %v563
        %vm571 = vmor %vm569, %vm570
        %v572 = vsel %vm571, %v563, %v568
        %v573 = vrsqrt.pop %v538
        %v574 = vmul.f32 %v573, %v538
        %v575 = vmul.f32 %v574, %v573
        %v576 = vmul.f32 0.5, %v575
        %v577 = vsub.f32 1.5, %v576
        %v578 = vmul.f32 %v573, %v577
        %vm579 = vweird.f32 %v538
        %vm580 = vweird.f32 %v573
        %vm581 = vmor %vm579, %vm580
        %v582 = vsel %vm581, %v573, %v578
        %v583 = vrsqrt.pop %v539
        %v584 = vmul.f32 %v583, %v539
        %v585 = vmul.f32 %v584, %v583
        %v586 = vmul.f32 0.5, %v585
        %v587 = vsub.f32 1.5, %v586
        %v588 = vmul.f32 %v583, %v587
        %vm589 = vweird.f32 %v539
        %vm590 = vweird.f32 %v583
        %vm591 = vmor %vm589, %vm590
        %v592 = vsel %vm591, %v583, %v588
        %v593 = vrsqrt.pop %v540
        %v594 = vmul.f32 %v593, %v540
        %v595 = vmul.f32 %v594, %v593
        %v596 = vmul.f32 0.5, %v595
        %v597 = vsub.f32 1.5, %v596
        %v598 = vmul.f32 %v593, %v597
        %vm599 = vweird.f32 %v540
        %vm600 = vweird.f32 %v593
        %vm601 = vmor %vm599, %vm600
        %v602 = vsel %vm601, %v593, %v598
        %v603 = vrsqrt.pop %v541
        %v604 = vmul.f32 %v603, %v541
        %v605 = vmul.f32 %v604, %v603
        %v606 = vmul.f32 0.5, %v605
        %v607 = vsub.f32 1.5, %v606
        %v608 = vmul.f32 %v603, %v607
        %vm609 = vweird.f32 %v541
        %vm610 = vweird.f32 %v603
        %vm611 = vmor %vm609, %vm610
        %v612 = vsel %vm611, %v603, %v608
        %v613 = vrsqrt.pop %v542
        %v614 = vmul.f32 %v613, %v542
        %v615 = vmul.f32 %v614, %v613
        %v616 = vmul.f32 0.5, %v615
        %v617 = vsub.f32 1.5, %v616
        %v618 = vmul.f32 %v613, %v617
        %vm619 = vweird.f32 %v542
        %vm620 = vweird.f32 %v613
        %vm621 = vmor %vm619, %vm620
        %v622 = vsel %vm621, %v613, %v618
        %v623 = vmul.f32 %v495, %v552
        %v624 = vmul.f32 %v496, %v562
        %v625 = vmul.f32 %v497, %v572
        %v626 = vmul.f32 %v498, %v582
        %v627 = vmul.f32 %v499, %v592
        %v628 = vmul.f32 %v500, %v602
        %v629 = vmul.f32 %v501, %v612
        %v630 = vmul.f32 %v502, %v622
        %v632 = vperm.slane %v462, 0
        %v634 = vmul.f32 %v623, %v632
        %v635 = vmul.f32 %v624, %v632
        %v636 = vmul.f32 %v625, %v632
        %v637 = vmul.f32 %v626, %v632
        %v638 = vmul.f32 %v627, %v632
        %v639 = vmul.f32 %v628, %v632
        %v640 = vmul.f32 %v629, %v632
        %v641 = vmul.f32 %v630, %v632
        %v643 = vperm.slane %v463, 0
        %v645 = vadd.f32 %v634, %v643
        %v646 = vadd.f32 %v635, %v643
        %v647 = vadd.f32 %v636, %v643
        %v648 = vadd.f32 %v637, %v643
        %v649 = vadd.f32 %v638, %v643
        %v650 = vadd.f32 %v639, %v643
        %v651 = vadd.f32 %v640, %v643
        %v652 = vadd.f32 %v641, %v643
        %v653 = vpack.c.bf16 %v646, %v645
        %v654 = vpack.c.bf16 %v648, %v647
        %v655 = vpack.c.bf16 %v650, %v649
        %v656 = vpack.c.bf16 %v652, %v651
        %v657 = vld [vmem:[#allocation10] sm:$0xff]
        %v658 = vld [vmem:[#allocation10 + $0x8] sm:$0xf]
        %v659 = vld [vmem:[#allocation10 + $0xc] sm:$0xff]
        %v660 = vld [vmem:[#allocation10 + $0x14] sm:$0xf]
        %v661 = vld [vmem:[#allocation10 + $0x18] sm:$0xff]
        %v662 = vld [vmem:[#allocation10 + $0x20] sm:$0xf]
        %v663 = vld [vmem:[#allocation10 + $0x24] sm:$0xff]
        %v664 = vld [vmem:[#allocation10 + $0x2c] sm:$0xf]
        %v665 = vld [vmem:[#allocation10 + $0x30] sm:$0xff]
        %v666 = vld [vmem:[#allocation10 + $0x38] sm:$0xf]
        %v667 = vld [vmem:[#allocation10 + $0x3c] sm:$0xff]
        %v668 = vld [vmem:[#allocation10 + $0x44] sm:$0xf]
        %v669 = vld [vmem:[#allocation10 + $0x48] sm:$0xff]
        %v670 = vld [vmem:[#allocation10 + $0x50] sm:$0xf]
        %v671 = vld [vmem:[#allocation10 + $0x54] sm:$0xff]
        %v672 = vld [vmem:[#allocation10 + $0x5c] sm:$0xf]
        %v673 = vld [vmem:[#allocation10 + $0x60] sm:$0xff]
        %v674 = vld [vmem:[#allocation10 + $0x68] sm:$0xf]
        %v675 = vld [vmem:[#allocation10 + $0x6c] sm:$0xff]
        %v676 = vld [vmem:[#allocation10 + $0x74] sm:$0xf]
        %v677 = vld [vmem:[#allocation10 + $0x78] sm:$0xff]
        %v678 = vld [vmem:[#allocation10 + $0x80] sm:$0xf]
        %v679 = vld [vmem:[#allocation10 + $0x84] sm:$0xff]
        %v680 = vld [vmem:[#allocation10 + $0x8c] sm:$0xf]
        %v681 = vld [vmem:[#allocation10 + $0x90] sm:$0xff]
        %v682 = vld [vmem:[#allocation10 + $0x98] sm:$0xf]
        %v683 = vld [vmem:[#allocation10 + $0x9c] sm:$0xff]
        %v684 = vld [vmem:[#allocation10 + $0xa4] sm:$0xf]
        %v685 = vld [vmem:[#allocation10 + $0xa8] sm:$0xff]
        %v686 = vld [vmem:[#allocation10 + $0xb0] sm:$0xf]
        %v687 = vld [vmem:[#allocation10 + $0xb4] sm:$0xff]
        %v688 = vld [vmem:[#allocation10 + $0xbc] sm:$0xf]
        %v689 = vld [vmem:[%s5] sm:$0x7]
        %v691 = vperm.slane %v689, 0
        %v692 = vperm.slane %v689, 1
        %v693 = vperm.slane %v689, 2
        %v729 = vunpack.c.l.b16 %v657
        %v730 = vunpack.c.h.b16 %v657
        %v731 = vunpack.c.l.b16 %v658
        %v732 = vunpack.c.l.b16 %v659
        %v733 = vunpack.c.h.b16 %v659
        %v734 = vunpack.c.l.b16 %v660
        %v735 = vunpack.c.l.b16 %v661
        %v736 = vunpack.c.h.b16 %v661
        %v737 = vunpack.c.l.b16 %v662
        %v738 = vunpack.c.l.b16 %v663
        %v739 = vunpack.c.h.b16 %v663
        %v740 = vunpack.c.l.b16 %v664
        %v741 = vunpack.c.l.b16 %v665
        %v742 = vunpack.c.h.b16 %v665
        %v743 = vunpack.c.l.b16 %v666
        %v744 = vunpack.c.l.b16 %v667
        %v745 = vunpack.c.h.b16 %v667
        %v746 = vunpack.c.l.b16 %v668
        %v747 = vunpack.c.l.b16 %v669
        %v748 = vunpack.c.h.b16 %v669
        %v749 = vunpack.c.l.b16 %v670
        %v750 = vunpack.c.l.b16 %v671
        %v751 = vunpack.c.h.b16 %v671
        %v752 = vunpack.c.l.b16 %v672
        %v753 = vunpack.c.l.b16 %v673
        %v754 = vunpack.c.h.b16 %v673
        %v755 = vunpack.c.l.b16 %v674
        %v756 = vunpack.c.l.b16 %v675
        %v757 = vunpack.c.h.b16 %v675
        %v758 = vunpack.c.l.b16 %v676
        %v759 = vunpack.c.l.b16 %v677
        %v760 = vunpack.c.h.b16 %v677
        %v761 = vunpack.c.l.b16 %v678
        %v762 = vunpack.c.l.b16 %v679
        %v763 = vunpack.c.h.b16 %v679
        %v764 = vunpack.c.l.b16 %v680
        %v765 = vunpack.c.l.b16 %v681
        %v766 = vunpack.c.h.b16 %v681
        %v767 = vunpack.c.l.b16 %v682
        %v768 = vunpack.c.l.b16 %v683
        %v769 = vunpack.c.h.b16 %v683
        %v770 = vunpack.c.l.b16 %v684
        %v771 = vunpack.c.l.b16 %v685
        %v772 = vunpack.c.h.b16 %v685
        %v773 = vunpack.c.l.b16 %v686
        %v774 = vunpack.c.l.b16 %v687
        %v775 = vunpack.c.h.b16 %v687
        %v776 = vunpack.c.l.b16 %v688
        %v777 = vpack.c.b16 %v732, %v729
        %v778 = vpack.c.b16 %v733, %v730
        %v779 = vpack.c.b16 %v734, %v731
        %v780 = vpack.c.b16 %v738, %v735
        %v781 = vpack.c.b16 %v739, %v736
        %v782 = vpack.c.b16 %v740, %v737
        %v783 = vpack.c.b16 %v744, %v741
        %v784 = vpack.c.b16 %v745, %v742
        %v785 = vpack.c.b16 %v746, %v743
        %v786 = vpack.c.b16 %v750, %v747
        %v787 = vpack.c.b16 %v751, %v748
        %v788 = vpack.c.b16 %v752, %v749
        %v789 = vpack.c.b16 %v756, %v753
        %v790 = vpack.c.b16 %v757, %v754
        %v791 = vpack.c.b16 %v758, %v755
        %v792 = vpack.c.b16 %v762, %v759
        %v793 = vpack.c.b16 %v763, %v760
        %v794 = vpack.c.b16 %v764, %v761
        %v795 = vpack.c.b16 %v768, %v765
        %v796 = vpack.c.b16 %v769, %v766
        %v797 = vpack.c.b16 %v770, %v767
        %v798 = vpack.c.b16 %v774, %v771
        %v799 = vpack.c.b16 %v775, %v772
        %v800 = vpack.c.b16 %v776, %v773
        %825 = vmatpush.bf16.msra.mxu0 %v798
        %826 = vmatpush.bf16.msra.mxu0 %v795
        %827 = vmatpush.bf16.msra.mxu0 %v792
        %828 = vmatpush.bf16.msra.mxu0 %v789
        %829 = vmatpush.bf16.msra.mxu0 %v786
        %830 = vmatpush.bf16.msra.mxu0 %v783
        %831 = vmatpush.bf16.msra.mxu0 %v780
        %832 = vmatpush.bf16.msra.mxu0 %v777
        %833 = vmatmul.bf16.gmra.mxu0 %v653
        %v834 = vpop.f32.mrf.mxu0
        %v835 = vadd.f32 %v691, %v834
        %v836 = vpop.f32.mrf.mxu0
        %v837 = vadd.f32 %v691, %v836
        %838 = vmatmul.bf16.gmra.mxu0 %v654
        %v839 = vpop.f32.mrf.mxu0
        %v840 = vadd.f32 %v691, %v839
        %v841 = vpop.f32.mrf.mxu0
        %v842 = vadd.f32 %v691, %v841
        %843 = vmatmul.bf16.gmra.mxu0 %v655
        %v844 = vpop.f32.mrf.mxu0
        %v845 = vadd.f32 %v691, %v844
        %v846 = vpop.f32.mrf.mxu0
        %v847 = vadd.f32 %v691, %v846
        %848 = vmatmul.bf16.gmra.mxu0 %v656
        %v849 = vpop.f32.mrf.mxu0
        %v850 = vadd.f32 %v691, %v849
        %v851 = vpop.f32.mrf.mxu0
        %v852 = vadd.f32 %v691, %v851
        %853 = vdwg.mxu0
        %854 = vmatpush.bf16.msra.mxu0 %v799
        %855 = vmatpush.bf16.msra.mxu0 %v796
        %856 = vmatpush.bf16.msra.mxu0 %v793
        %857 = vmatpush.bf16.msra.mxu0 %v790
        %858 = vmatpush.bf16.msra.mxu0 %v787
        %859 = vmatpush.bf16.msra.mxu0 %v784
        %860 = vmatpush.bf16.msra.mxu0 %v781
        %861 = vmatpush.bf16.msra.mxu0 %v778
        %862 = vmatmul.bf16.gmra.mxu0 %v653
        %v863 = vpop.f32.mrf.mxu0
        %v864 = vadd.f32 %v692, %v863
        %v865 = vpop.f32.mrf.mxu0
        %v866 = vadd.f32 %v692, %v865
        %867 = vmatmul.bf16.gmra.mxu0 %v654
        %v868 = vpop.f32.mrf.mxu0
        %v869 = vadd.f32 %v692, %v868
        %v870 = vpop.f32.mrf.mxu0
        %v871 = vadd.f32 %v692, %v870
        %872 = vmatmul.bf16.gmra.mxu0 %v655
        %v873 = vpop.f32.mrf.mxu0
        %v874 = vadd.f32 %v692, %v873
        %v875 = vpop.f32.mrf.mxu0
        %v876 = vadd.f32 %v692, %v875
        %877 = vmatmul.bf16.gmra.mxu0 %v656
        %v878 = vpop.f32.mrf.mxu0
        %v879 = vadd.f32 %v692, %v878
        %v880 = vpop.f32.mrf.mxu0
        %v881 = vadd.f32 %v692, %v880
        %882 = vdwg.mxu0
        %883 = vmatpush.bf16.msra.mxu0 %v800
        %884 = vmatpush.bf16.msra.mxu0 %v797
        %885 = vmatpush.bf16.msra.mxu0 %v794
        %886 = vmatpush.bf16.msra.mxu0 %v791
        %887 = vmatpush.bf16.msra.mxu0 %v788
        %888 = vmatpush.bf16.msra.mxu0 %v785
        %889 = vmatpush.bf16.msra.mxu0 %v782
        %890 = vmatpush.bf16.msra.mxu0 %v779
        %891 = vmatmul.bf16.gmra.mxu0 %v653
        %v892 = vpop.f32.mrf.mxu0
        %v893 = vadd.f32 %v693, %v892
        %v894 = vpop.f32.mrf.mxu0
        %v895 = vadd.f32 %v693, %v894
        %896 = vmatmul.bf16.gmra.mxu0 %v654
        %v897 = vpop.f32.mrf.mxu0
        %v898 = vadd.f32 %v693, %v897
        %v899 = vpop.f32.mrf.mxu0
        %v900 = vadd.f32 %v693, %v899
        %901 = vmatmul.bf16.gmra.mxu0 %v655
        %v902 = vpop.f32.mrf.mxu0
        %v903 = vadd.f32 %v693, %v902
        %v904 = vpop.f32.mrf.mxu0
        %v905 = vadd.f32 %v693, %v904
        %906 = vmatmul.bf16.gmra.mxu0 %v656
        %v907 = vpop.f32.mrf.mxu0
        %v908 = vadd.f32 %v693, %v907
        %v909 = vpop.f32.mrf.mxu0
        %v910 = vadd.f32 %v693, %v909
        %911 = vdwg.mxu0
        %v912 = vld [vmem:[#allocation11] sm:$0x7]
        %v913 = vld [vmem:[%s7] sm:$0x7]
        %v914 = vadd.f32 %v835, %v864
        %v915 = vadd.f32 %v914, %v893
        %916 = vadd.xlane.f32.xlu0 %v915
        %v917 = vpop.xlane.xlu0 %916
        %v918 = vadd.f32 %v837, %v866
        %v919 = vadd.f32 %v918, %v895
        %920 = vadd.xlane.f32.xlu0 %v919
        %v921 = vpop.xlane.xlu0 %920
        %v922 = vadd.f32 %v840, %v869
        %v923 = vadd.f32 %v922, %v898
        %924 = vadd.xlane.f32.xlu0 %v923
        %v925 = vpop.xlane.xlu0 %924
        %v926 = vadd.f32 %v842, %v871
        %v927 = vadd.f32 %v926, %v900
        %928 = vadd.xlane.f32.xlu0 %v927
        %v929 = vpop.xlane.xlu0 %928
        %v930 = vadd.f32 %v845, %v874
        %v931 = vadd.f32 %v930, %v903
        %932 = vadd.xlane.f32.xlu0 %v931
        %v933 = vpop.xlane.xlu0 %932
        %v934 = vadd.f32 %v847, %v876
        %v935 = vadd.f32 %v934, %v905
        %936 = vadd.xlane.f32.xlu0 %v935
        %v937 = vpop.xlane.xlu0 %936
        %v938 = vadd.f32 %v850, %v879
        %v939 = vadd.f32 %v938, %v908
        %940 = vadd.xlane.f32.xlu0 %v939
        %v941 = vpop.xlane.xlu0 %940
        %v942 = vadd.f32 %v852, %v881
        %v943 = vadd.f32 %v942, %v910
        %944 = vadd.xlane.f32.xlu0 %v943
        %v945 = vpop.xlane.xlu0 %944
        %v946 = vrcp.pop 384.0
        %v947 = vmul.f32 384.0, %v946
        %v948 = vsub.f32 1.0, %v947
        %v949 = vmul.f32 %v946, %v948
        %v950 = vadd.f32 %v946, %v949
        %vm951 = vweird.f32 %v946
        %v952 = vsel %vm951, %v946, %v950
        %v953 = vmul.f32 %v917, %v952
        %v954 = vmul.f32 %v921, %v952
        %v955 = vmul.f32 %v925, %v952
        %v956 = vmul.f32 %v929, %v952
        %v957 = vmul.f32 %v933, %v952
        %v958 = vmul.f32 %v937, %v952
        %v959 = vmul.f32 %v941, %v952
        %v960 = vmul.f32 %v945, %v952
        %v961 = vsub.f32 %v835, %v953
        %v962 = vsub.f32 %v864, %v953
        %v963 = vsub.f32 %v893, %v953
        %v964 = vsub.f32 %v837, %v954
        %v965 = vsub.f32 %v866, %v954
        %v966 = vsub.f32 %v895, %v954
        %v967 = vsub.f32 %v840, %v955
        %v968 = vsub.f32 %v869, %v955
        %v969 = vsub.f32 %v898, %v955
        %v970 = vsub.f32 %v842, %v956
        %v971 = vsub.f32 %v871, %v956
        %v972 = vsub.f32 %v900, %v956
        %v973 = vsub.f32 %v845, %v957
        %v974 = vsub.f32 %v874, %v957
        %v975 = vsub.f32 %v903, %v957
        %v976 = vsub.f32 %v847, %v958
        %v977 = vsub.f32 %v876, %v958
        %v978 = vsub.f32 %v905, %v958
        %v979 = vsub.f32 %v850, %v959
        %v980 = vsub.f32 %v879, %v959
        %v981 = vsub.f32 %v908, %v959
        %v982 = vsub.f32 %v852, %v960
        %v983 = vsub.f32 %v881, %v960
        %v984 = vsub.f32 %v910, %v960
        %v985 = vmul.f32 %v961, %v961
        %v986 = vmul.f32 %v962, %v962
        %v987 = vmul.f32 %v963, %v963
        %v988 = vmul.f32 %v964, %v964
        %v989 = vmul.f32 %v965, %v965
        %v990 = vmul.f32 %v966, %v966
        %v991 = vmul.f32 %v967, %v967
        %v992 = vmul.f32 %v968, %v968
        %v993 = vmul.f32 %v969, %v969
        %v994 = vmul.f32 %v970, %v970
        %v995 = vmul.f32 %v971, %v971
        %v996 = vmul.f32 %v972, %v972
        %v997 = vmul.f32 %v973, %v973
        %v998 = vmul.f32 %v974, %v974
        %v999 = vmul.f32 %v975, %v975
        %v1000 = vmul.f32 %v976, %v976
        %v1001 = vmul.f32 %v977, %v977
        %v1002 = vmul.f32 %v978, %v978
        %v1003 = vmul.f32 %v979, %v979
        %v1004 = vmul.f32 %v980, %v980
        %v1005 = vmul.f32 %v981, %v981
        %v1006 = vmul.f32 %v982, %v982
        %v1007 = vmul.f32 %v983, %v983
        %v1008 = vmul.f32 %v984, %v984
        %v1009 = vadd.f32 %v985, %v986
        %v1010 = vadd.f32 %v1009, %v987
        %1011 = vadd.xlane.f32.xlu0 %v1010
        %v1012 = vpop.xlane.xlu0 %1011
        %v1013 = vadd.f32 %v988, %v989
        %v1014 = vadd.f32 %v1013, %v990
        %1015 = vadd.xlane.f32.xlu0 %v1014
        %v1016 = vpop.xlane.xlu0 %1015
        %v1017 = vadd.f32 %v991, %v992
        %v1018 = vadd.f32 %v1017, %v993
        %1019 = vadd.xlane.f32.xlu0 %v1018
        %v1020 = vpop.xlane.xlu0 %1019
        %v1021 = vadd.f32 %v994, %v995
        %v1022 = vadd.f32 %v1021, %v996
        %1023 = vadd.xlane.f32.xlu0 %v1022
        %v1024 = vpop.xlane.xlu0 %1023
        %v1025 = vadd.f32 %v997, %v998
        %v1026 = vadd.f32 %v1025, %v999
        %1027 = vadd.xlane.f32.xlu0 %v1026
        %v1028 = vpop.xlane.xlu0 %1027
        %v1029 = vadd.f32 %v1000, %v1001
        %v1030 = vadd.f32 %v1029, %v1002
        %1031 = vadd.xlane.f32.xlu0 %v1030
        %v1032 = vpop.xlane.xlu0 %1031
        %v1033 = vadd.f32 %v1003, %v1004
        %v1034 = vadd.f32 %v1033, %v1005
        %1035 = vadd.xlane.f32.xlu0 %v1034
        %v1036 = vpop.xlane.xlu0 %1035
        %v1037 = vadd.f32 %v1006, %v1007
        %v1038 = vadd.f32 %v1037, %v1008
        %1039 = vadd.xlane.f32.xlu0 %v1038
        %v1040 = vpop.xlane.xlu0 %1039
        %v1041 = vmul.f32 %v1012, %v952
        %v1042 = vmul.f32 %v1016, %v952
        %v1043 = vmul.f32 %v1020, %v952
        %v1044 = vmul.f32 %v1024, %v952
        %v1045 = vmul.f32 %v1028, %v952
        %v1046 = vmul.f32 %v1032, %v952
        %v1047 = vmul.f32 %v1036, %v952
        %v1048 = vmul.f32 %v1040, %v952
        %v1049 = vadd.f32 %v1041, 1e-05
        %v1050 = vadd.f32 %v1042, 1e-05
        %v1051 = vadd.f32 %v1043, 1e-05
        %v1052 = vadd.f32 %v1044, 1e-05
        %v1053 = vadd.f32 %v1045, 1e-05
        %v1054 = vadd.f32 %v1046, 1e-05
        %v1055 = vadd.f32 %v1047, 1e-05
        %v1056 = vadd.f32 %v1048, 1e-05
        %v1057 = vrsqrt.pop %v1049
        %v1058 = vmul.f32 %v1057, %v1049
        %v1059 = vmul.f32 %v1058, %v1057
        %v1060 = vmul.f32 0.5, %v1059
        %v1061 = vsub.f32 1.5, %v1060
        %v1062 = vmul.f32 %v1057, %v1061
        %vm1063 = vweird.f32 %v1049
        %vm1064 = vweird.f32 %v1057
        %vm1065 = vmor %vm1063, %vm1064
        %v1066 = vsel %vm1065, %v1057, %v1062
        %v1067 = vrsqrt.pop %v1050
        %v1068 = vmul.f32 %v1067, %v1050
        %v1069 = vmul.f32 %v1068, %v1067
        %v1070 = vmul.f32 0.5, %v1069
        %v1071 = vsub.f32 1.5, %v1070
        %v1072 = vmul.f32 %v1067, %v1071
        %vm1073 = vweird.f32 %v1050
        %vm1074 = vweird.f32 %v1067
        %vm1075 = vmor %vm1073, %vm1074
        %v1076 = vsel %vm1075, %v1067, %v1072
        %v1077 = vrsqrt.pop %v1051
        %v1078 = vmul.f32 %v1077, %v1051
        %v1079 = vmul.f32 %v1078, %v1077
        %v1080 = vmul.f32 0.5, %v1079
        %v1081 = vsub.f32 1.5, %v1080
        %v1082 = vmul.f32 %v1077, %v1081
        %vm1083 = vweird.f32 %v1051
        %vm1084 = vweird.f32 %v1077
        %vm1085 = vmor %vm1083, %vm1084
        %v1086 = vsel %vm1085, %v1077, %v1082
        %v1087 = vrsqrt.pop %v1052
        %v1088 = vmul.f32 %v1087, %v1052
        %v1089 = vmul.f32 %v1088, %v1087
        %v1090 = vmul.f32 0.5, %v1089
        %v1091 = vsub.f32 1.5, %v1090
        %v1092 = vmul.f32 %v1087, %v1091
        %vm1093 = vweird.f32 %v1052
        %vm1094 = vweird.f32 %v1087
        %vm1095 = vmor %vm1093, %vm1094
        %v1096 = vsel %vm1095, %v1087, %v1092
        %v1097 = vrsqrt.pop %v1053
        %v1098 = vmul.f32 %v1097, %v1053
        %v1099 = vmul.f32 %v1098, %v1097
        %v1100 = vmul.f32 0.5, %v1099
        %v1101 = vsub.f32 1.5, %v1100
        %v1102 = vmul.f32 %v1097, %v1101
        %vm1103 = vweird.f32 %v1053
        %vm1104 = vweird.f32 %v1097
        %vm1105 = vmor %vm1103, %vm1104
        %v1106 = vsel %vm1105, %v1097, %v1102
        %v1107 = vrsqrt.pop %v1054
        %v1108 = vmul.f32 %v1107, %v1054
        %v1109 = vmul.f32 %v1108, %v1107
        %v1110 = vmul.f32 0.5, %v1109
        %v1111 = vsub.f32 1.5, %v1110
        %v1112 = vmul.f32 %v1107, %v1111
        %vm1113 = vweird.f32 %v1054
        %vm1114 = vweird.f32 %v1107
        %vm1115 = vmor %vm1113, %vm1114
        %v1116 = vsel %vm1115, %v1107, %v1112
        %v1117 = vrsqrt.pop %v1055
        %v1118 = vmul.f32 %v1117, %v1055
        %v1119 = vmul.f32 %v1118, %v1117
        %v1120 = vmul.f32 0.5, %v1119
        %v1121 = vsub.f32 1.5, %v1120
        %v1122 = vmul.f32 %v1117, %v1121
        %vm1123 = vweird.f32 %v1055
        %vm1124 = vweird.f32 %v1117
        %vm1125 = vmor %vm1123, %vm1124
        %v1126 = vsel %vm1125, %v1117, %v1122
        %v1127 = vrsqrt.pop %v1056
        %v1128 = vmul.f32 %v1127, %v1056
        %v1129 = vmul.f32 %v1128, %v1127
        %v1130 = vmul.f32 0.5, %v1129
        %v1131 = vsub.f32 1.5, %v1130
        %v1132 = vmul.f32 %v1127, %v1131
        %vm1133 = vweird.f32 %v1056
        %vm1134 = vweird.f32 %v1127
        %vm1135 = vmor %vm1133, %vm1134
        %v1136 = vsel %vm1135, %v1127, %v1132
        %v1137 = vmul.f32 %v961, %v1066
        %v1138 = vmul.f32 %v962, %v1066
        %v1139 = vmul.f32 %v963, %v1066
        %v1140 = vmul.f32 %v964, %v1076
        %v1141 = vmul.f32 %v965, %v1076
        %v1142 = vmul.f32 %v966, %v1076
        %v1143 = vmul.f32 %v967, %v1086
        %v1144 = vmul.f32 %v968, %v1086
        %v1145 = vmul.f32 %v969, %v1086
        %v1146 = vmul.f32 %v970, %v1096
        %v1147 = vmul.f32 %v971, %v1096
        %v1148 = vmul.f32 %v972, %v1096
        %v1149 = vmul.f32 %v973, %v1106
        %v1150 = vmul.f32 %v974, %v1106
        %v1151 = vmul.f32 %v975, %v1106
        %v1152 = vmul.f32 %v976, %v1116
        %v1153 = vmul.f32 %v977, %v1116
        %v1154 = vmul.f32 %v978, %v1116
        %v1155 = vmul.f32 %v979, %v1126
        %v1156 = vmul.f32 %v980, %v1126
        %v1157 = vmul.f32 %v981, %v1126
        %v1158 = vmul.f32 %v982, %v1136
        %v1159 = vmul.f32 %v983, %v1136
        %v1160 = vmul.f32 %v984, %v1136
        %v1162 = vperm.slane %v912, 0
        %v1163 = vperm.slane %v912, 1
        %v1164 = vperm.slane %v912, 2
        %v1168 = vmul.f32 %v1137, %v1162
        %v1169 = vmul.f32 %v1138, %v1163
        %v1170 = vmul.f32 %v1139, %v1164
        %v1171 = vmul.f32 %v1140, %v1162
        %v1172 = vmul.f32 %v1141, %v1163
        %v1173 = vmul.f32 %v1142, %v1164
        %v1174 = vmul.f32 %v1143, %v1162
        %v1175 = vmul.f32 %v1144, %v1163
        %v1176 = vmul.f32 %v1145, %v1164
        %v1177 = vmul.f32 %v1146, %v1162
        %v1178 = vmul.f32 %v1147, %v1163
        %v1179 = vmul.f32 %v1148, %v1164
        %v1180 = vmul.f32 %v1149, %v1162
        %v1181 = vmul.f32 %v1150, %v1163
        %v1182 = vmul.f32 %v1151, %v1164
        %v1183 = vmul.f32 %v1152, %v1162
        %v1184 = vmul.f32 %v1153, %v1163
        %v1185 = vmul.f32 %v1154, %v1164
        %v1186 = vmul.f32 %v1155, %v1162
        %v1187 = vmul.f32 %v1156, %v1163
        %v1188 = vmul.f32 %v1157, %v1164
        %v1189 = vmul.f32 %v1158, %v1162
        %v1190 = vmul.f32 %v1159, %v1163
        %v1191 = vmul.f32 %v1160, %v1164
        %v1193 = vperm.slane %v913, 0
        %v1194 = vperm.slane %v913, 1
        %v1195 = vperm.slane %v913, 2
        %v1199 = vadd.f32 %v1168, %v1193
        %v1200 = vadd.f32 %v1169, %v1194
        %v1201 = vadd.f32 %v1170, %v1195
        %v1202 = vadd.f32 %v1171, %v1193
        %v1203 = vadd.f32 %v1172, %v1194
        %v1204 = vadd.f32 %v1173, %v1195
        %v1205 = vadd.f32 %v1174, %v1193
        %v1206 = vadd.f32 %v1175, %v1194
        %v1207 = vadd.f32 %v1176, %v1195
        %v1208 = vadd.f32 %v1177, %v1193
        %v1209 = vadd.f32 %v1178, %v1194
        %v1210 = vadd.f32 %v1179, %v1195
        %v1211 = vadd.f32 %v1180, %v1193
        %v1212 = vadd.f32 %v1181, %v1194
        %v1213 = vadd.f32 %v1182, %v1195
        %v1214 = vadd.f32 %v1183, %v1193
        %v1215 = vadd.f32 %v1184, %v1194
        %v1216 = vadd.f32 %v1185, %v1195
        %v1217 = vadd.f32 %v1186, %v1193
        %v1218 = vadd.f32 %v1187, %v1194
        %v1219 = vadd.f32 %v1188, %v1195
        %v1220 = vadd.f32 %v1189, %v1193
        %v1221 = vadd.f32 %v1190, %v1194
        %v1222 = vadd.f32 %v1191, %v1195
        %v1223 = vld [vmem:[%s392] sm:$0xff]
        %v1224 = vld [vmem:[%s392 + $0x8] sm:$0xf]
        %v1225 = vld [vmem:[%s392 + $0xc] sm:$0xff]
        %v1226 = vld [vmem:[%s392 + $0x14] sm:$0xf]
        %v1227 = vld [vmem:[%s392 + $0x18] sm:$0xff]
        %v1228 = vld [vmem:[%s392 + $0x20] sm:$0xf]
        %v1229 = vld [vmem:[%s392 + $0x24] sm:$0xff]
        %v1230 = vld [vmem:[%s392 + $0x2c] sm:$0xf]
        %v1231 = vld [vmem:[%s392 + $0x30] sm:$0xff]
        %v1232 = vld [vmem:[%s392 + $0x38] sm:$0xf]
        %v1233 = vld [vmem:[%s392 + $0x3c] sm:$0xff]
        %v1234 = vld [vmem:[%s392 + $0x44] sm:$0xf]
        %v1235 = vld [vmem:[%s392 + $0x48] sm:$0xff]
        %v1236 = vld [vmem:[%s392 + $0x50] sm:$0xf]
        %v1237 = vld [vmem:[%s392 + $0x54] sm:$0xff]
        %v1238 = vld [vmem:[%s392 + $0x5c] sm:$0xf]
        %v1239 = vunpack.c.l.bf16 %v1223
        %v1240 = vunpack.c.h.bf16 %v1223
        %v1241 = vunpack.c.l.bf16 %v1224
        %v1242 = vunpack.c.l.bf16 %v1225
        %v1243 = vunpack.c.h.bf16 %v1225
        %v1244 = vunpack.c.l.bf16 %v1226
        %v1245 = vunpack.c.l.bf16 %v1227
        %v1246 = vunpack.c.h.bf16 %v1227
        %v1247 = vunpack.c.l.bf16 %v1228
        %v1248 = vunpack.c.l.bf16 %v1229
        %v1249 = vunpack.c.h.bf16 %v1229
        %v1250 = vunpack.c.l.bf16 %v1230
        %v1251 = vunpack.c.l.bf16 %v1231
        %v1252 = vunpack.c.h.bf16 %v1231
        %v1253 = vunpack.c.l.bf16 %v1232
        %v1254 = vunpack.c.l.bf16 %v1233
        %v1255 = vunpack.c.h.bf16 %v1233
        %v1256 = vunpack.c.l.bf16 %v1234
        %v1257 = vunpack.c.l.bf16 %v1235
        %v1258 = vunpack.c.h.bf16 %v1235
        %v1259 = vunpack.c.l.bf16 %v1236
        %v1260 = vunpack.c.l.bf16 %v1237
        %v1261 = vunpack.c.h.bf16 %v1237
        %v1262 = vunpack.c.l.bf16 %v1238
        %v1263 = vadd.f32 %v1199, %v1239
        %v1264 = vadd.f32 %v1200, %v1240
        %v1265 = vadd.f32 %v1201, %v1241
        %v1266 = vadd.f32 %v1202, %v1242
        %v1267 = vadd.f32 %v1203, %v1243
        %v1268 = vadd.f32 %v1204, %v1244
        %v1269 = vadd.f32 %v1205, %v1245
        %v1270 = vadd.f32 %v1206, %v1246
        %v1271 = vadd.f32 %v1207, %v1247
        %v1272 = vadd.f32 %v1208, %v1248
        %v1273 = vadd.f32 %v1209, %v1249
        %v1274 = vadd.f32 %v1210, %v1250
        %v1275 = vadd.f32 %v1211, %v1251
        %v1276 = vadd.f32 %v1212, %v1252
        %v1277 = vadd.f32 %v1213, %v1253
        %v1278 = vadd.f32 %v1214, %v1254
        %v1279 = vadd.f32 %v1215, %v1255
        %v1280 = vadd.f32 %v1216, %v1256
        %v1281 = vadd.f32 %v1217, %v1257
        %v1282 = vadd.f32 %v1218, %v1258
        %v1283 = vadd.f32 %v1219, %v1259
        %v1284 = vadd.f32 %v1220, %v1260
        %v1285 = vadd.f32 %v1221, %v1261
        %v1286 = vadd.f32 %v1222, %v1262
        %v1287 = vpack.c.bf16 %v1264, %v1263
        %v1288 = vpack.c.bf16 %v1265, %v1265
        %v1289 = vpack.c.bf16 %v1267, %v1266
        %v1290 = vpack.c.bf16 %v1268, %v1268
        %v1291 = vpack.c.bf16 %v1270, %v1269
        %v1292 = vpack.c.bf16 %v1271, %v1271
        %v1293 = vpack.c.bf16 %v1273, %v1272
        %v1294 = vpack.c.bf16 %v1274, %v1274
        %v1295 = vpack.c.bf16 %v1276, %v1275
        %v1296 = vpack.c.bf16 %v1277, %v1277
        %v1297 = vpack.c.bf16 %v1279, %v1278
        %v1298 = vpack.c.bf16 %v1280, %v1280
        %v1299 = vpack.c.bf16 %v1282, %v1281
        %v1300 = vpack.c.bf16 %v1283, %v1283
        %v1301 = vpack.c.bf16 %v1285, %v1284
        %v1302 = vpack.c.bf16 %v1286, %v1286
        %1303 = vst [vmem:[%s450] sm:$0xff] %v1287
        %1304 = vst [vmem:[%s450 + $0x8] sm:$0xf] %v1288
        %1305 = vst [vmem:[%s450 + $0xc] sm:$0xff] %v1289
        %1306 = vst [vmem:[%s450 + $0x14] sm:$0xf] %v1290
        %1307 = vst [vmem:[%s450 + $0x18] sm:$0xff] %v1291
        %1308 = vst [vmem:[%s450 + $0x20] sm:$0xf] %v1292
        %1309 = vst [vmem:[%s450 + $0x24] sm:$0xff] %v1293
        %1310 = vst [vmem:[%s450 + $0x2c] sm:$0xf] %v1294
        %1311 = vst [vmem:[%s450 + $0x30] sm:$0xff] %v1295
        %1312 = vst [vmem:[%s450 + $0x38] sm:$0xf] %v1296
        %1313 = vst [vmem:[%s450 + $0x3c] sm:$0xff] %v1297
        %1314 = vst [vmem:[%s450 + $0x44] sm:$0xf] %v1298
        %1315 = vst [vmem:[%s450 + $0x48] sm:$0xff] %v1299
        %1316 = vst [vmem:[%s450 + $0x50] sm:$0xf] %v1300
        %1317 = vst [vmem:[%s450 + $0x54] sm:$0xff] %v1301
        %1318 = vst [vmem:[%s450 + $0x5c] sm:$0xf] %v1302
        %s1319 = sand.u32 %s234, 1
        %s1320 = scalar_lea.sflag [#allocation4], %s1319
        %s1321 = sand.u32 %s234, 1
        %s1322 = smul.addr %s1321, 96
        %s1323 = scalar_lea.vmem [#allocation13], %s1322
        // Predicated region
        $region77: #{tpu_custom_call.1} parent=51 // pred_check
          %p1324 = pneg %p244
        $region78: #{tpu_custom_call.1} parent=51 // pred_check_branch
          %1326 = sbr.rel (%p1324) target = $region80
        $region79: #{tpu_custom_call.1} parent=51 // pred_region
          %s1327 = smul.u32 8, %s35
          %1329 = vsyncadd %s1320, 0
          %s1330 = smul.addr %s1327, 3
          %s1331 = smul.addr %s34, 24
          %s1332 = sadd.s32 %s1330, %s1331
          %s1333 = smul.addr %s1332, 4
          %s1334 = scalar_lea.hbm %s8, %s1333
          %s1335 = sshll.u32 %s1323, 4
          %s1336 = int_to_ptr.vmem [resolvable:$true] %s1335
          %s1337 = sshll.u32 %s1334, 4
          %s1338 = int_to_ptr.hbm [resolvable:$true] %s1337
          %1343 = dma.vmem_to_hbm [thread:$0]  %s1336, 1536, %s1338, %s1320, 192, 192, 12
        $region80: #{tpu_custom_call.1} parent=51 // pred_fallthru
          _
      $region52: #{tpu_custom_call.1} parent=5 // pred_fallthru
        _
      %p1344 = scmp.le.s32.totalorder 2, %s25
      // Predicated region
      $region81: #{tpu_custom_call.1} parent=5 // pred_check
        %p1345 = pneg %p1344
      $region82: #{tpu_custom_call.1} parent=5 // pred_check_branch
        %1347 = sbr.rel (%p1345) target = $region84
      $region83: #{tpu_custom_call.1} parent=5 // pred_region
        %s1348 = ssub.s32 %s25, 2
        // Predicated region
        $region85: #{tpu_custom_call.1} parent=83 // pred_check
          %p1349 = pneg %p250
        $region86: #{tpu_custom_call.1} parent=83 // pred_check_branch
          %1351 = sbr.rel (%p1349) target = $region88
        $region87: #{tpu_custom_call.1} parent=83 // pred_region
          %s1352 = sand.u32 %s235, 1
          %s1353 = scalar_lea.sflag [#allocation4], %s1352
          %s1354 = sand.u32 %s235, 1
          %s1355 = smul.addr %s1354, 96
          %s1356 = scalar_lea.vmem [#allocation13], %s1355
          %1358 = dma.done %s1353, 1536
        $region88: #{tpu_custom_call.1} parent=83 // pred_fallthru
          _
      $region84: #{tpu_custom_call.1} parent=5 // pred_fallthru
        _
    $region6: #{tpu_custom_call.1} parent=1 // loop_footer
      %s29 = sadd.s32 1, %s25
    $region7: #{tpu_custom_call.1} parent=1 // loop_footer_branch
      %24 = sbr.rel target = $region3
    $region8: #{tpu_custom_call.1} parent=1 // loop_exit
      _
    %1359 = vsyncpa [#allocation3], 1
    %s1360 = scalar_lea.sflag [#allocation3], 1
    %1361 = vsyncpa %s1360, 1
    %1362 = vsyncpa [#allocation6], 1
    %s1363 = scalar_lea.sflag [#allocation6], 1
    %1364 = vsyncpa %s1363, 1
    %1365 = vsyncpa [#allocation9], 1
    %1366 = vsyncpa [#allocation12], 1
    %1367 = vsyncpa [#allocation4], 1
    %s1368 = scalar_lea.sflag [#allocation4], 1
    %1369 = vsyncpa %s1368, 1

</llo_original>
